<compile_context>
chip_gen: v7x
topology: tpu7x:2x2x1
jax: 0.10.0
libtpu: 0.0.40
codegen_flags: <defaults>
</compile_context>

<pallas_src>
import jax
import jax.numpy as jnp
from jax.experimental import pallas as pl
from jax.experimental.pallas import tpu as pltpu

# Sublane alignment that satisfies both bf16 (16,128) and f32 (8,128) tiling.
_ALIGN = 16


def _round_up(x, m):
    return (x + m - 1) // m * m


def _ae_fused_kernel(x_ref,
                     w1_ref, b1_ref,
                     w2_ref, b2_ref,
                     w3_ref, b3_ref,
                     w4_ref, b4_ref,
                     o_ref):
    """Fused decoder(encoder(x)) for one (tm, D) batch tile.

    x arrives bf16, weights bf16, biases f32.  All matmuls accumulate in f32
    on the MXU; bias add / ReLU run in f32 on the VPU.  Intermediates live
    entirely in VMEM/vregs (never written to HBM).
    """
    x = x_ref[...]                                             # (tm, D) bf16

    # encoder: Linear(D, H) -> ReLU
    h1 = jnp.dot(x, w1_ref[...], preferred_element_type=jnp.float32)
    h1 = jnp.maximum(h1 + b1_ref[...], 0.0)                    # (tm, H) f32

    # encoder: Linear(H, Z)
    z = jnp.dot(h1.astype(jnp.bfloat16), w2_ref[...],
                preferred_element_type=jnp.float32)
    z = z + b2_ref[...]                                        # (tm, Z) f32

    # decoder: Linear(Z, H) -> ReLU
    h2 = jnp.dot(z.astype(jnp.bfloat16), w3_ref[...],
                 preferred_element_type=jnp.float32)
    h2 = jnp.maximum(h2 + b3_ref[...], 0.0)                    # (tm, H) f32

    # decoder: Linear(H, D)
    y = jnp.dot(h2.astype(jnp.bfloat16), w4_ref[...],
                preferred_element_type=jnp.float32)
    y = y + b4_ref[...]                                        # (tm, D) f32

    o_ref[...] = y.astype(o_ref.dtype)


def _choose_batch_tile(n, tm_cap):
    """Pick (tile_rows, num_tiles) for the batch axis.

    - n <= 16: a single full-array block (exempt from the (16,128) rule).
    - otherwise: enough tiles that each tile is <= tm_cap rows AND there are
      at least 2 tiles (so v7x's two TensorCores both get work), with the tile
      size re-balanced so per-tile padding waste is < 16 rows.  The last grid
      block may be partial; no jnp.pad / HBM copy is performed.
    """
    if n <= _ALIGN:
        return n, 1
    tm_cap = max(_ALIGN, _round_up(tm_cap, _ALIGN))
    t = max(pl.cdiv(n, tm_cap), 2)
    tm_eff = _round_up(pl.cdiv(n, t), _ALIGN)
    tm_eff = min(tm_eff, (n // _ALIGN) * _ALIGN)   # keep block rows <= n
    return tm_eff, pl.cdiv(n, tm_eff)


def _vmem_limit_bytes():
    """Generation-aware scoped-VMEM budget (conservative on unknown parts)."""
    try:
        kind = jax.devices()[0].device_kind.lower()
    except Exception:  # pragma: no cover - defensive
        kind = ""
    if "v5" in kind or "v6" in kind:
        return 96 * 1024 * 1024      # 128 MiB physical VMEM on v5e/v6e
    return 48 * 1024 * 1024          # stay well under v7x's 64 MiB physical


def autoencoder_forward(params, x_nchw, *, tm=512, out_dtype=None):
    """AutoEncoder.forward: x_hat = decoder(encoder(x)). NCHW in, NCHW out."""
    n, c, h, w = x_nchw.shape
    d = c * h * w
    out_dtype = x_nchw.dtype if out_dtype is None else out_dtype

    w1, b1 = params["enc1"]
    w2, b2 = params["enc2"]
    w3, b3 = params["dec1"]
    w4, b4 = params["dec2"]
    hid = w1.shape[1]
    zdim = w2.shape[1]
    assert d % 128 == 0, "flattened feature dim must be lane-dense (mult of 128)"

    # Stream x as bf16: the kernel casts to bf16 for the MXU anyway, so this
    # is numerically identical and halves the dominant HBM read stream.
    x = x_nchw.reshape(n, d).astype(jnp.bfloat16)

    tm_eff, n_tiles = _choose_batch_tile(n, tm)

    # bf16 weights for the MXU (halves DMA + VMEM); f32 biases for the VPU.
    w1b, w2b, w3b, w4b = (wi.astype(jnp.bfloat16) for wi in (w1, w2, w3, w4))
    b1r, b2r, b3r, b4r = (
        bi.astype(jnp.float32).reshape(1, -1) for bi in (b1, b2, b3, b4)
    )

    def _resident(shape):
        # Full-array block, same index every grid step -> fetched once and
        # kept resident in VMEM across all batch tiles.
        return pl.BlockSpec(shape, lambda i: (0, 0))

    out = pl.pallas_call(
        _ae_fused_kernel,
        out_shape=jax.ShapeDtypeStruct((n, d), out_dtype),
        grid_spec=pltpu.PrefetchScalarGridSpec(
            num_scalar_prefetch=0,
            grid=(n_tiles,),
            in_specs=[
                pl.BlockSpec((tm_eff, d), lambda i: (i, 0)),   # x batch tile
                _resident((d, hid)), _resident((1, hid)),      # enc1
                _resident((hid, zdim)), _resident((1, zdim)),  # enc2
                _resident((zdim, hid)), _resident((1, hid)),   # dec1
                _resident((hid, d)), _resident((1, d)),        # dec2
            ],
            out_specs=pl.BlockSpec((tm_eff, d), lambda i: (i, 0)),
        ),
        compiler_params=pltpu.CompilerParams(
            dimension_semantics=("parallel",),       # batch tiles -> megacore
            vmem_limit_bytes=_vmem_limit_bytes(),
        ),
    )(x, w1b, b1r, w2b, b2r, w3b, b3r, w4b, b4r)

    return out.reshape(n, c, h, w)


def _init_linear(key, fan_in, fan_out, dtype=jnp.float32):
    """Mimics torch.nn.Linear default init (uniform +/- 1/sqrt(fan_in))."""
    kw, kb = jax.random.split(key)
    bound = 1.0 / jnp.sqrt(jnp.asarray(fan_in, dtype))
    w = jax.random.uniform(kw, (fan_in, fan_out), dtype, -bound, bound)
    b = jax.random.uniform(kb, (fan_out,), dtype, -bound, bound)
    return w, b


def make_autoencoder_params(key, d_in, d_hidden, d_latent):
    k1, k2, k3, k4 = jax.random.split(key, 4)
    return {
        "enc1": _init_linear(k1, d_in, d_hidden),
        "enc2": _init_linear(k2, d_hidden, d_latent),
        "dec1": _init_linear(k3, d_latent, d_hidden),
        "dec2": _init_linear(k4, d_hidden, d_in),
    }


def autoencoder_reference(params, x_nchw):
    """Pure-JAX reference mirroring the kernel math (bf16 dots, f32 accum)."""
    n, c, h, w = x_nchw.shape
    x = x_nchw.reshape(n, c * h * w).astype(jnp.float32)

    def lin(xv, wv, bv, relu):
        y = jnp.dot(xv.astype(jnp.bfloat16), wv.astype(jnp.bfloat16),
                    preferred_element_type=jnp.float32)
        y = y + bv.astype(jnp.float32)
        return jnp.maximum(y, 0.0) if relu else y

    h1 = lin(x, *params["enc1"], True)
    z = lin(h1, *params["enc2"], False)
    h2 = lin(z, *params["dec1"], True)
    x_hat = lin(h2, *params["dec2"], False)
    return x_hat.reshape(n, c, h, w).astype(x_nchw.dtype)


if __name__ == "__main__":
    key = jax.random.PRNGKey(0)
    kx, kp = jax.random.split(key)

    # small shapes consistent with an image autoencoder
    N, C, H, W = 2, 4, 16, 16
    D = C * H * W          # 1024
    HID, Z = 128, 32

    x = jax.random.normal(kx, (N, C, H, W), jnp.float32)
    params = make_autoencoder_params(kp, D, HID, Z)

    x_hat = autoencoder_forward(params, x)
    x_hat = jax.block_until_ready(x_hat)

    ref = autoencoder_reference(params, x)
    assert x_hat.shape == x.shape
    assert jnp.allclose(x_hat, ref, atol=1e-2, rtol=1e-2), (
        float(jnp.max(jnp.abs(x_hat - ref)))
    )

    print("KERNEL_OK")
</pallas_src>

<mosaic_0001>
module attributes {stable_mosaic.version = 11 : i64} {
  func.func @_ae_fused_kernel(%arg0: i32, %arg1: memref<2x1024xbf16, #tpu.memory_space<vmem>>, %arg2: memref<1024x128xbf16, #tpu.memory_space<vmem>>, %arg3: memref<1x128xf32, #tpu.memory_space<vmem>>, %arg4: memref<128x32xbf16, #tpu.memory_space<vmem>>, %arg5: memref<1x32xf32, #tpu.memory_space<vmem>>, %arg6: memref<32x128xbf16, #tpu.memory_space<vmem>>, %arg7: memref<1x128xf32, #tpu.memory_space<vmem>>, %arg8: memref<128x1024xbf16, #tpu.memory_space<vmem>>, %arg9: memref<1x1024xf32, #tpu.memory_space<vmem>>, %arg10: memref<2x1024xf32, #tpu.memory_space<vmem>>) attributes {dimension_semantics = [#tpu.dimension_semantics<parallel>], iteration_bounds = array<i64: 1>, scalar_prefetch = 0 : i64, scratch_operands = 0 : i64, tpu.core_type = #tpu.core_type<tc>, window_params = [{transform_indices = @transform_0, window_bounds = array<i64: 2, 1024>}, {pipeline_mode = #tpu.pipeline_mode<synchronous>, transform_indices = @transform_1, window_bounds = array<i64: 1024, 128>}, {pipeline_mode = #tpu.pipeline_mode<synchronous>, transform_indices = @transform_2, window_bounds = array<i64: 1, 128>}, {pipeline_mode = #tpu.pipeline_mode<synchronous>, transform_indices = @transform_3, window_bounds = array<i64: 128, 32>}, {pipeline_mode = #tpu.pipeline_mode<synchronous>, transform_indices = @transform_4, window_bounds = array<i64: 1, 32>}, {pipeline_mode = #tpu.pipeline_mode<synchronous>, transform_indices = @transform_5, window_bounds = array<i64: 32, 128>}, {pipeline_mode = #tpu.pipeline_mode<synchronous>, transform_indices = @transform_6, window_bounds = array<i64: 1, 128>}, {pipeline_mode = #tpu.pipeline_mode<synchronous>, transform_indices = @transform_7, window_bounds = array<i64: 128, 1024>}, {pipeline_mode = #tpu.pipeline_mode<synchronous>, transform_indices = @transform_8, window_bounds = array<i64: 1, 1024>}, {transform_indices = @transform_9, window_bounds = array<i64: 2, 1024>}]} {
    %c0 = arith.constant 0 : index
    %c0_0 = arith.constant 0 : index
    %0 = vector.load %arg1[%c0, %c0_0] : memref<2x1024xbf16, #tpu.memory_space<vmem>>, vector<2x1024xbf16>
    %c0_1 = arith.constant 0 : index
    %c0_2 = arith.constant 0 : index
    %1 = vector.load %arg2[%c0_1, %c0_2] : memref<1024x128xbf16, #tpu.memory_space<vmem>>, vector<1024x128xbf16>
    %cst = arith.constant dense<0.000000e+00> : vector<2x128xf32>
    %2 = tpu.matmul %0, %1, %cst {dimension_numbers = #tpu.dot_dimension_numbers<[1], [0], [0], [1], [0, 0, 1, 1], [], []>} : vector<2x1024xbf16>, vector<1024x128xbf16>, vector<2x128xf32> -> vector<2x128xf32>
    %c0_3 = arith.constant 0 : index
    %c0_4 = arith.constant 0 : index
    %3 = vector.load %arg3[%c0_3, %c0_4] : memref<1x128xf32, #tpu.memory_space<vmem>>, vector<1x128xf32>
    %4 = vector.broadcast %3 : vector<1x128xf32> to vector<2x128xf32>
    %5 = arith.addf %2, %4 : vector<2x128xf32>
    %cst_5 = arith.constant 0.000000e+00 : f32
    %6 = vector.broadcast %cst_5 : f32 to vector<2x128xf32>
    %7 = arith.maximumf %5, %6 : vector<2x128xf32>
    %8 = arith.truncf %7 : vector<2x128xf32> to vector<2x128xbf16>
    %c0_6 = arith.constant 0 : index
    %c0_7 = arith.constant 0 : index
    %9 = vector.load %arg4[%c0_6, %c0_7] : memref<128x32xbf16, #tpu.memory_space<vmem>>, vector<128x32xbf16>
    %cst_8 = arith.constant dense<0.000000e+00> : vector<2x32xf32>
    %10 = tpu.matmul %8, %9, %cst_8 {dimension_numbers = #tpu.dot_dimension_numbers<[1], [0], [0], [1], [0, 0, 1, 1], [], []>} : vector<2x128xbf16>, vector<128x32xbf16>, vector<2x32xf32> -> vector<2x32xf32>
    %c0_9 = arith.constant 0 : index
    %c0_10 = arith.constant 0 : index
    %11 = vector.load %arg5[%c0_9, %c0_10] : memref<1x32xf32, #tpu.memory_space<vmem>>, vector<1x32xf32>
    %12 = vector.broadcast %11 : vector<1x32xf32> to vector<2x32xf32>
    %13 = arith.addf %10, %12 : vector<2x32xf32>
    %14 = arith.truncf %13 : vector<2x32xf32> to vector<2x32xbf16>
    %c0_11 = arith.constant 0 : index
    %c0_12 = arith.constant 0 : index
    %15 = vector.load %arg6[%c0_11, %c0_12] : memref<32x128xbf16, #tpu.memory_space<vmem>>, vector<32x128xbf16>
    %cst_13 = arith.constant dense<0.000000e+00> : vector<2x128xf32>
    %16 = tpu.matmul %14, %15, %cst_13 {dimension_numbers = #tpu.dot_dimension_numbers<[1], [0], [0], [1], [0, 0, 1, 1], [], []>} : vector<2x32xbf16>, vector<32x128xbf16>, vector<2x128xf32> -> vector<2x128xf32>
    %c0_14 = arith.constant 0 : index
    %c0_15 = arith.constant 0 : index
    %17 = vector.load %arg7[%c0_14, %c0_15] : memref<1x128xf32, #tpu.memory_space<vmem>>, vector<1x128xf32>
    %18 = vector.broadcast %17 : vector<1x128xf32> to vector<2x128xf32>
    %19 = arith.addf %16, %18 : vector<2x128xf32>
    %cst_16 = arith.constant 0.000000e+00 : f32
    %20 = vector.broadcast %cst_16 : f32 to vector<2x128xf32>
    %21 = arith.maximumf %19, %20 : vector<2x128xf32>
    %22 = arith.truncf %21 : vector<2x128xf32> to vector<2x128xbf16>
    %c0_17 = arith.constant 0 : index
    %c0_18 = arith.constant 0 : index
    %23 = vector.load %arg8[%c0_17, %c0_18] : memref<128x1024xbf16, #tpu.memory_space<vmem>>, vector<128x1024xbf16>
    %cst_19 = arith.constant dense<0.000000e+00> : vector<2x1024xf32>
    %24 = tpu.matmul %22, %23, %cst_19 {dimension_numbers = #tpu.dot_dimension_numbers<[1], [0], [0], [1], [0, 0, 1, 1], [], []>} : vector<2x128xbf16>, vector<128x1024xbf16>, vector<2x1024xf32> -> vector<2x1024xf32>
    %c0_20 = arith.constant 0 : index
    %c0_21 = arith.constant 0 : index
    %25 = vector.load %arg9[%c0_20, %c0_21] : memref<1x1024xf32, #tpu.memory_space<vmem>>, vector<1x1024xf32>
    %26 = vector.broadcast %25 : vector<1x1024xf32> to vector<2x1024xf32>
    %27 = arith.addf %24, %26 : vector<2x1024xf32>
    %c0_22 = arith.constant 0 : index
    %c0_23 = arith.constant 0 : index
    %28 = vector.load %arg10[%c0_22, %c0_23] : memref<2x1024xf32, #tpu.memory_space<vmem>>, vector<2x1024xf32>
    tpu.vector_store %arg10[%c0_22, %c0_23], %27 {strides = array<i32>} : memref<2x1024xf32, #tpu.memory_space<vmem>>, vector<2x1024xf32>,
    return
  }
  func.func @transform_0(%arg0: i32) -> (i32, i32) {
    %c0_i32 = arith.constant 0 : i32
    %c0_i32_0 = arith.constant 0 : i32
    return %arg0, %c0_i32 : i32, i32
  }
  func.func @transform_1(%arg0: i32) -> (i32, i32) {
    %c0_i32 = arith.constant 0 : i32
    %c0_i32_0 = arith.constant 0 : i32
    %c0_i32_1 = arith.constant 0 : i32
    return %c0_i32, %c0_i32_0 : i32, i32
  }
  func.func @transform_2(%arg0: i32) -> (i32, i32) {
    %c0_i32 = arith.constant 0 : i32
    %c0_i32_0 = arith.constant 0 : i32
    %c0_i32_1 = arith.constant 0 : i32
    return %c0_i32, %c0_i32_0 : i32, i32
  }
  func.func @transform_3(%arg0: i32) -> (i32, i32) {
    %c0_i32 = arith.constant 0 : i32
    %c0_i32_0 = arith.constant 0 : i32
    %c0_i32_1 = arith.constant 0 : i32
    return %c0_i32, %c0_i32_0 : i32, i32
  }
  func.func @transform_4(%arg0: i32) -> (i32, i32) {
    %c0_i32 = arith.constant 0 : i32
    %c0_i32_0 = arith.constant 0 : i32
    %c0_i32_1 = arith.constant 0 : i32
    return %c0_i32, %c0_i32_0 : i32, i32
  }
  func.func @transform_5(%arg0: i32) -> (i32, i32) {
    %c0_i32 = arith.constant 0 : i32
    %c0_i32_0 = arith.constant 0 : i32
    %c0_i32_1 = arith.constant 0 : i32
    return %c0_i32, %c0_i32_0 : i32, i32
  }
  func.func @transform_6(%arg0: i32) -> (i32, i32) {
    %c0_i32 = arith.constant 0 : i32
    %c0_i32_0 = arith.constant 0 : i32
    %c0_i32_1 = arith.constant 0 : i32
    return %c0_i32, %c0_i32_0 : i32, i32
  }
  func.func @transform_7(%arg0: i32) -> (i32, i32) {
    %c0_i32 = arith.constant 0 : i32
    %c0_i32_0 = arith.constant 0 : i32
    %c0_i32_1 = arith.constant 0 : i32
    return %c0_i32, %c0_i32_0 : i32, i32
  }
  func.func @transform_8(%arg0: i32) -> (i32, i32) {
    %c0_i32 = arith.constant 0 : i32
    %c0_i32_0 = arith.constant 0 : i32
    %c0_i32_1 = arith.constant 0 : i32
    return %c0_i32, %c0_i32_0 : i32, i32
  }
  func.func @transform_9(%arg0: i32) -> (i32, i32) {
    %c0_i32 = arith.constant 0 : i32
    %c0_i32_0 = arith.constant 0 : i32
    return %arg0, %c0_i32 : i32, i32
  }
}

</mosaic_0001>

<llo_original>
// kernel: tpu_custom_call.1
$region0: #{tpu_custom_call.1}
  #allocation0 [shape = 'u32[]', space=smem, size = 0x4, offset = 0x4, fixed_abs, tag = 'smem constant byte address 0x4 - core index']
  #allocation1 [shape = 'u32[144,128]{1,0:T(1,128)}', space=vmem, size = 0x12000, scoped, tag = 'internal scratch']
  %s0 = inlined_call_operand.vmem [shape: bf16[2,1024], index: 0, kind: input, shape index: {}]
  %s1 = inlined_call_operand.hbm [shape: bf16[1024,128], index: 1, kind: input, shape index: {}]
  %s2 = inlined_call_operand.vmem [shape: f32[1,128], index: 2, kind: input, shape index: {}]
  %s3 = inlined_call_operand.vmem [shape: bf16[128,32], index: 3, kind: input, shape index: {}]
  %s4 = inlined_call_operand.vmem [shape: f32[1,32], index: 4, kind: input, shape index: {}]
  %s5 = inlined_call_operand.vmem [shape: bf16[32,128], index: 5, kind: input, shape index: {}]
  %s6 = inlined_call_operand.vmem [shape: f32[1,128], index: 6, kind: input, shape index: {}]
  %s7 = inlined_call_operand.hbm [shape: bf16[128,1024], index: 7, kind: input, shape index: {}]
  %s8 = inlined_call_operand.vmem [shape: f32[1,1024], index: 8, kind: input, shape index: {}]
  %s9 = inlined_call_operand.hbm [shape: f32[2,1024], index: 9, kind: output, shape index: {}]
  %s10 = sld [smem:[#allocation0]]
  $region54: #{tpu_custom_call.1} parent=0
    _
  %s12 = ssub.s32 1, %s10
  %s13 = scalar_select 0, %s12, %s10
  $region1: #{tpu_custom_call.1} parent=0
    #allocation2 [shape = 'u8[262144]{0}', space=vmem, size = 0x40000, scoped, tag = 'input window, operand 1, single buffered']
    #allocation3 [shape = 's32[1]{0}', space=sflag, size = 0x4, scoped, tag = 'scoped memory for tpu_custom_call.1']
    #allocation4 [shape = 's32[1]{0}', space=sflag, size = 0x4, scoped, tag = 'scoped memory for tpu_custom_call.1']
    #allocation5 [shape = 'u8[262144]{0}', space=vmem, size = 0x40000, scoped, tag = 'input window, operand 7, single buffered']
    #allocation6 [shape = 's32[1]{0}', space=sflag, size = 0x4, scoped, tag = 'scoped memory for tpu_custom_call.1']
    #allocation7 [shape = 'u8[8192]{0}', space=vmem, size = 0x2000, scoped, tag = 'output window, operand 0, single buffered']
    %14 = vsyncpa [#allocation3], 0
    %15 = vsyncpa [#allocation6], 0
    %16 = vsyncpa [#allocation4], 0
    // Predicated region
    $region2: #{tpu_custom_call.1} parent=1 // pred_check
      _
    $region3: #{tpu_custom_call.1} parent=1 // pred_check_branch
      %18 = sbr.rel (0) target = $region5
    $region4: #{tpu_custom_call.1} parent=1 // pred_region
      _
    $region5: #{tpu_custom_call.1} parent=1 // pred_fallthru
      _
    // Predicated region
    $region6: #{tpu_custom_call.1} parent=1 // pred_check
      _
    $region7: #{tpu_custom_call.1} parent=1 // pred_check_branch
      %20 = sbr.rel (0) target = $region9
    $region8: #{tpu_custom_call.1} parent=1 // pred_region
      %s22 = ssub.s32 8192, 8192
      %23 = vsyncadd [#allocation3], %s22
      %s24 = sshll.u32 [#allocation2], 4
      %s25 = int_to_ptr.vmem [resolvable:$true] %s24
      %30 = dma.hbm_to_vmem [thread:$0]  %s1, 8192, %s25, [#allocation3], 64, 64, 4
    $region9: #{tpu_custom_call.1} parent=1 // pred_fallthru
      _
    // Predicated region
    $region10: #{tpu_custom_call.1} parent=1 // pred_check
      _
    $region11: #{tpu_custom_call.1} parent=1 // pred_check_branch
      %32 = sbr.rel (0) target = $region13
    $region12: #{tpu_custom_call.1} parent=1 // pred_region
      _
    $region13: #{tpu_custom_call.1} parent=1 // pred_fallthru
      _
    // Predicated region
    $region14: #{tpu_custom_call.1} parent=1 // pred_check
      _
    $region15: #{tpu_custom_call.1} parent=1 // pred_check_branch
      %34 = sbr.rel (0) target = $region17
    $region16: #{tpu_custom_call.1} parent=1 // pred_region
      _
    $region17: #{tpu_custom_call.1} parent=1 // pred_fallthru
      _
    // Predicated region
    $region18: #{tpu_custom_call.1} parent=1 // pred_check
      _
    $region19: #{tpu_custom_call.1} parent=1 // pred_check_branch
      %36 = sbr.rel (0) target = $region21
    $region20: #{tpu_custom_call.1} parent=1 // pred_region
      _
    $region21: #{tpu_custom_call.1} parent=1 // pred_fallthru
      _
    // Predicated region
    $region22: #{tpu_custom_call.1} parent=1 // pred_check
      _
    $region23: #{tpu_custom_call.1} parent=1 // pred_check_branch
      %38 = sbr.rel (0) target = $region25
    $region24: #{tpu_custom_call.1} parent=1 // pred_region
      _
    $region25: #{tpu_custom_call.1} parent=1 // pred_fallthru
      _
    // Predicated region
    $region26: #{tpu_custom_call.1} parent=1 // pred_check
      _
    $region27: #{tpu_custom_call.1} parent=1 // pred_check_branch
      %40 = sbr.rel (0) target = $region29
    $region28: #{tpu_custom_call.1} parent=1 // pred_region
      _
    $region29: #{tpu_custom_call.1} parent=1 // pred_fallthru
      _
    // Predicated region
    $region30: #{tpu_custom_call.1} parent=1 // pred_check
      _
    $region31: #{tpu_custom_call.1} parent=1 // pred_check_branch
      %42 = sbr.rel (0) target = $region33
    $region32: #{tpu_custom_call.1} parent=1 // pred_region
      %s44 = ssub.s32 8192, 8192
      %45 = vsyncadd [#allocation6], %s44
      %s46 = sshll.u32 [#allocation5], 4
      %s47 = int_to_ptr.vmem [resolvable:$true] %s46
      %52 = dma.hbm_to_vmem [thread:$0]  %s7, 8192, %s47, [#allocation6], 512, 512, 32
    $region33: #{tpu_custom_call.1} parent=1 // pred_fallthru
      _
    // Predicated region
    $region34: #{tpu_custom_call.1} parent=1 // pred_check
      _
    $region35: #{tpu_custom_call.1} parent=1 // pred_check_branch
      %54 = sbr.rel (0) target = $region37
    $region36: #{tpu_custom_call.1} parent=1 // pred_region
      _
    $region37: #{tpu_custom_call.1} parent=1 // pred_fallthru
      _
    // Predicated region
    $region38: #{tpu_custom_call.1} parent=1 // pred_check
      _
    $region39: #{tpu_custom_call.1} parent=1 // pred_check_branch
      %56 = sbr.rel (0) target = $region41
    $region40: #{tpu_custom_call.1} parent=1 // pred_region
      %57 = dma.done [#allocation3], 8192
    $region41: #{tpu_custom_call.1} parent=1 // pred_fallthru
      _
    // Predicated region
    $region42: #{tpu_custom_call.1} parent=1 // pred_check
      _
    $region43: #{tpu_custom_call.1} parent=1 // pred_check_branch
      %59 = sbr.rel (0) target = $region45
    $region44: #{tpu_custom_call.1} parent=1 // pred_region
      %60 = dma.done [#allocation6], 8192
    $region45: #{tpu_custom_call.1} parent=1 // pred_fallthru
      _
    %v62 = vld [vmem:[%s0] sm:$0xff]
    %v63 = vld [vmem:[#allocation2] sm:$0xf]
    %v64 = vld [vmem:[#allocation2 + $0x4] sm:$0xf]
    %v65 = vld [vmem:[#allocation2 + $0x8] sm:$0xf]
    %v66 = vld [vmem:[#allocation2 + $0xc] sm:$0xf]
    %v67 = vld [vmem:[#allocation2 + $0x10] sm:$0xf]
    %v68 = vld [vmem:[#allocation2 + $0x14] sm:$0xf]
    %v69 = vld [vmem:[#allocation2 + $0x18] sm:$0xf]
    %v70 = vld [vmem:[#allocation2 + $0x1c] sm:$0xf]
    %v71 = vld [vmem:[#allocation2 + $0x20] sm:$0xf]
    %v72 = vld [vmem:[#allocation2 + $0x24] sm:$0xf]
    %v73 = vld [vmem:[#allocation2 + $0x28] sm:$0xf]
    %v74 = vld [vmem:[#allocation2 + $0x2c] sm:$0xf]
    %v75 = vld [vmem:[#allocation2 + $0x30] sm:$0xf]
    %v76 = vld [vmem:[#allocation2 + $0x34] sm:$0xf]
    %v77 = vld [vmem:[#allocation2 + $0x38] sm:$0xf]
    %v78 = vld [vmem:[#allocation2 + $0x3c] sm:$0xf]
    %v79 = vld [vmem:[#allocation2 + $0x40] sm:$0xf]
    %v80 = vld [vmem:[#allocation2 + $0x44] sm:$0xf]
    %v81 = vld [vmem:[#allocation2 + $0x48] sm:$0xf]
    %v82 = vld [vmem:[#allocation2 + $0x4c] sm:$0xf]
    %v83 = vld [vmem:[#allocation2 + $0x50] sm:$0xf]
    %v84 = vld [vmem:[#allocation2 + $0x54] sm:$0xf]
    %v85 = vld [vmem:[#allocation2 + $0x58] sm:$0xf]
    %v86 = vld [vmem:[#allocation2 + $0x5c] sm:$0xf]
    %v87 = vld [vmem:[#allocation2 + $0x60] sm:$0xf]
    %v88 = vld [vmem:[#allocation2 + $0x64] sm:$0xf]
    %v89 = vld [vmem:[#allocation2 + $0x68] sm:$0xf]
    %v90 = vld [vmem:[#allocation2 + $0x6c] sm:$0xf]
    %v91 = vld [vmem:[#allocation2 + $0x70] sm:$0xf]
    %v92 = vld [vmem:[#allocation2 + $0x74] sm:$0xf]
    %v93 = vld [vmem:[#allocation2 + $0x78] sm:$0xf]
    %v94 = vld [vmem:[#allocation2 + $0x7c] sm:$0xf]
    %v95 = vld [vmem:[#allocation2 + $0x80] sm:$0xf]
    %v96 = vld [vmem:[#allocation2 + $0x84] sm:$0xf]
    %v97 = vld [vmem:[#allocation2 + $0x88] sm:$0xf]
    %v98 = vld [vmem:[#allocation2 + $0x8c] sm:$0xf]
    %v99 = vld [vmem:[#allocation2 + $0x90] sm:$0xf]
    %v100 = vld [vmem:[#allocation2 + $0x94] sm:$0xf]
    %v101 = vld [vmem:[#allocation2 + $0x98] sm:$0xf]
    %v102 = vld [vmem:[#allocation2 + $0x9c] sm:$0xf]
    %v103 = vld [vmem:[#allocation2 + $0xa0] sm:$0xf]
    %v104 = vld [vmem:[#allocation2 + $0xa4] sm:$0xf]
    %v105 = vld [vmem:[#allocation2 + $0xa8] sm:$0xf]
    %v106 = vld [vmem:[#allocation2 + $0xac] sm:$0xf]
    %v107 = vld [vmem:[#allocation2 + $0xb0] sm:$0xf]
    %v108 = vld [vmem:[#allocation2 + $0xb4] sm:$0xf]
    %v109 = vld [vmem:[#allocation2 + $0xb8] sm:$0xf]
    %v110 = vld [vmem:[#allocation2 + $0xbc] sm:$0xf]
    %v111 = vld [vmem:[#allocation2 + $0xc0] sm:$0xf]
    %v112 = vld [vmem:[#allocation2 + $0xc4] sm:$0xf]
    %v113 = vld [vmem:[#allocation2 + $0xc8] sm:$0xf]
    %v114 = vld [vmem:[#allocation2 + $0xcc] sm:$0xf]
    %v115 = vld [vmem:[#allocation2 + $0xd0] sm:$0xf]
    %v116 = vld [vmem:[#allocation2 + $0xd4] sm:$0xf]
    %v117 = vld [vmem:[#allocation2 + $0xd8] sm:$0xf]
    %v118 = vld [vmem:[#allocation2 + $0xdc] sm:$0xf]
    %v119 = vld [vmem:[#allocation2 + $0xe0] sm:$0xf]
    %v120 = vld [vmem:[#allocation2 + $0xe4] sm:$0xf]
    %v121 = vld [vmem:[#allocation2 + $0xe8] sm:$0xf]
    %v122 = vld [vmem:[#allocation2 + $0xec] sm:$0xf]
    %v123 = vld [vmem:[#allocation2 + $0xf0] sm:$0xf]
    %v124 = vld [vmem:[#allocation2 + $0xf4] sm:$0xf]
    %v125 = vld [vmem:[#allocation2 + $0xf8] sm:$0xf]
    %v126 = vld [vmem:[#allocation2 + $0xfc] sm:$0xf]
    %v127 = vld [vmem:[#allocation2 + $0x100] sm:$0xf]
    %v128 = vld [vmem:[#allocation2 + $0x104] sm:$0xf]
    %v129 = vld [vmem:[#allocation2 + $0x108] sm:$0xf]
    %v130 = vld [vmem:[#allocation2 + $0x10c] sm:$0xf]
    %v131 = vld [vmem:[#allocation2 + $0x110] sm:$0xf]
    %v132 = vld [vmem:[#allocation2 + $0x114] sm:$0xf]
    %v133 = vld [vmem:[#allocation2 + $0x118] sm:$0xf]
    %v134 = vld [vmem:[#allocation2 + $0x11c] sm:$0xf]
    %v135 = vld [vmem:[#allocation2 + $0x120] sm:$0xf]
    %v136 = vld [vmem:[#allocation2 + $0x124] sm:$0xf]
    %v137 = vld [vmem:[#allocation2 + $0x128] sm:$0xf]
    %v138 = vld [vmem:[#allocation2 + $0x12c] sm:$0xf]
    %v139 = vld [vmem:[#allocation2 + $0x130] sm:$0xf]
    %v140 = vld [vmem:[#allocation2 + $0x134] sm:$0xf]
    %v141 = vld [vmem:[#allocation2 + $0x138] sm:$0xf]
    %v142 = vld [vmem:[#allocation2 + $0x13c] sm:$0xf]
    %v143 = vld [vmem:[#allocation2 + $0x140] sm:$0xf]
    %v144 = vld [vmem:[#allocation2 + $0x144] sm:$0xf]
    %v145 = vld [vmem:[#allocation2 + $0x148] sm:$0xf]
    %v146 = vld [vmem:[#allocation2 + $0x14c] sm:$0xf]
    %v147 = vld [vmem:[#allocation2 + $0x150] sm:$0xf]
    %v148 = vld [vmem:[#allocation2 + $0x154] sm:$0xf]
    %v149 = vld [vmem:[#allocation2 + $0x158] sm:$0xf]
    %v150 = vld [vmem:[#allocation2 + $0x15c] sm:$0xf]
    %v151 = vld [vmem:[#allocation2 + $0x160] sm:$0xf]
    %v152 = vld [vmem:[#allocation2 + $0x164] sm:$0xf]
    %v153 = vld [vmem:[#allocation2 + $0x168] sm:$0xf]
    %v154 = vld [vmem:[#allocation2 + $0x16c] sm:$0xf]
    %v155 = vld [vmem:[#allocation2 + $0x170] sm:$0xf]
    %v156 = vld [vmem:[#allocation2 + $0x174] sm:$0xf]
    %v157 = vld [vmem:[#allocation2 + $0x178] sm:$0xf]
    %v158 = vld [vmem:[#allocation2 + $0x17c] sm:$0xf]
    %v159 = vld [vmem:[#allocation2 + $0x180] sm:$0xf]
    %v160 = vld [vmem:[#allocation2 + $0x184] sm:$0xf]
    %v161 = vld [vmem:[#allocation2 + $0x188] sm:$0xf]
    %v162 = vld [vmem:[#allocation2 + $0x18c] sm:$0xf]
    %v163 = vld [vmem:[#allocation2 + $0x190] sm:$0xf]
    %v164 = vld [vmem:[#allocation2 + $0x194] sm:$0xf]
    %v165 = vld [vmem:[#allocation2 + $0x198] sm:$0xf]
    %v166 = vld [vmem:[#allocation2 + $0x19c] sm:$0xf]
    %v167 = vld [vmem:[#allocation2 + $0x1a0] sm:$0xf]
    %v168 = vld [vmem:[#allocation2 + $0x1a4] sm:$0xf]
    %v169 = vld [vmem:[#allocation2 + $0x1a8] sm:$0xf]
    %v170 = vld [vmem:[#allocation2 + $0x1ac] sm:$0xf]
    %v171 = vld [vmem:[#allocation2 + $0x1b0] sm:$0xf]
    %v172 = vld [vmem:[#allocation2 + $0x1b4] sm:$0xf]
    %v173 = vld [vmem:[#allocation2 + $0x1b8] sm:$0xf]
    %v174 = vld [vmem:[#allocation2 + $0x1bc] sm:$0xf]
    %v175 = vld [vmem:[#allocation2 + $0x1c0] sm:$0xf]
    %v176 = vld [vmem:[#allocation2 + $0x1c4] sm:$0xf]
    %v177 = vld [vmem:[#allocation2 + $0x1c8] sm:$0xf]
    %v178 = vld [vmem:[#allocation2 + $0x1cc] sm:$0xf]
    %v179 = vld [vmem:[#allocation2 + $0x1d0] sm:$0xf]
    %v180 = vld [vmem:[#allocation2 + $0x1d4] sm:$0xf]
    %v181 = vld [vmem:[#allocation2 + $0x1d8] sm:$0xf]
    %v182 = vld [vmem:[#allocation2 + $0x1dc] sm:$0xf]
    %v183 = vld [vmem:[#allocation2 + $0x1e0] sm:$0xf]
    %v184 = vld [vmem:[#allocation2 + $0x1e4] sm:$0xf]
    %v185 = vld [vmem:[#allocation2 + $0x1e8] sm:$0xf]
    %v186 = vld [vmem:[#allocation2 + $0x1ec] sm:$0xf]
    %v187 = vld [vmem:[#allocation2 + $0x1f0] sm:$0xf]
    %v188 = vld [vmem:[#allocation2 + $0x1f4] sm:$0xf]
    %v189 = vld [vmem:[#allocation2 + $0x1f8] sm:$0xf]
    %v190 = vld [vmem:[#allocation2 + $0x1fc] sm:$0xf]
    %v191 = vld [vmem:[%s2] sm:$0x1]
    %v193 = vlaneseq
    %v194 = vshrl.u32 %v193, 7
    %v195 = vsub.s32 0, %v194
    %v196 = vrot.slane %v191, %v195
    %v199 = vcombine.high %v62, %v62
    %v201 = vunpack.c.l.s4 1966171168
    %v202 = vunpack.c.0.s8 %v201
    %v203 = vlaneseq
    %v204 = vshrl.u32 %v203, 7
    %v205 = vsub.s32 %v202, %v204
    %v206 = vrot.slane %v62, %v205
    %v208 = vunpack.c.l.s4 1966171168
    %v209 = vunpack.c.0.s8 %v208
    %v210 = vlaneseq
    %v211 = vshrl.u32 %v210, 7
    %v212 = vsub.s32 %v209, %v211
    %v213 = vrot.slane %v199, %v212
    %v214 = vcombine.high %v206, %v206
    %v215 = vcombine.high %v213, %v213
    %v217 = vunpack.c.l.s4 1966171168
    %v218 = vunpack.c.0.s8 %v217
    %v219 = vlaneseq
    %v220 = vshrl.u32 %v219, 7
    %v221 = vsub.s32 %v218, %v220
    %v222 = vrot.slane %v206, %v221
    %v224 = vunpack.c.l.s4 1966171168
    %v225 = vunpack.c.0.s8 %v224
    %v226 = vlaneseq
    %v227 = vshrl.u32 %v226, 7
    %v228 = vsub.s32 %v225, %v227
    %v229 = vrot.slane %v213, %v228
    %v231 = vunpack.c.l.s4 1966171168
    %v232 = vunpack.c.0.s8 %v231
    %v233 = vlaneseq
    %v234 = vshrl.u32 %v233, 7
    %v235 = vsub.s32 %v232, %v234
    %v236 = vrot.slane %v214, %v235
    %v238 = vunpack.c.l.s4 1966171168
    %v239 = vunpack.c.0.s8 %v238
    %v240 = vlaneseq
    %v241 = vshrl.u32 %v240, 7
    %v242 = vsub.s32 %v239, %v241
    %v243 = vrot.slane %v215, %v242
    %v244 = vcombine.high %v222, %v222
    %v245 = vcombine.high %v229, %v229
    %v246 = vcombine.high %v236, %v236
    %v247 = vcombine.high %v243, %v243
    %v384 = vunpack.c.l.b16 %v63
    %v385 = vunpack.c.l.b16 %v64
    %v386 = vunpack.c.l.b16 %v65
    %v387 = vunpack.c.l.b16 %v66
    %v388 = vunpack.c.l.b16 %v67
    %v389 = vunpack.c.l.b16 %v68
    %v390 = vunpack.c.l.b16 %v69
    %v391 = vunpack.c.l.b16 %v70
    %v392 = vunpack.c.l.b16 %v71
    %v393 = vunpack.c.l.b16 %v72
    %v394 = vunpack.c.l.b16 %v73
    %v395 = vunpack.c.l.b16 %v74
    %v396 = vunpack.c.l.b16 %v75
    %v397 = vunpack.c.l.b16 %v76
    %v398 = vunpack.c.l.b16 %v77
    %v399 = vunpack.c.l.b16 %v78
    %v400 = vunpack.c.l.b16 %v79
    %v401 = vunpack.c.l.b16 %v80
    %v402 = vunpack.c.l.b16 %v81
    %v403 = vunpack.c.l.b16 %v82
    %v404 = vunpack.c.l.b16 %v83
    %v405 = vunpack.c.l.b16 %v84
    %v406 = vunpack.c.l.b16 %v85
    %v407 = vunpack.c.l.b16 %v86
    %v408 = vunpack.c.l.b16 %v87
    %v409 = vunpack.c.l.b16 %v88
    %v410 = vunpack.c.l.b16 %v89
    %v411 = vunpack.c.l.b16 %v90
    %v412 = vunpack.c.l.b16 %v91
    %v413 = vunpack.c.l.b16 %v92
    %v414 = vunpack.c.l.b16 %v93
    %v415 = vunpack.c.l.b16 %v94
    %v416 = vunpack.c.l.b16 %v95
    %v417 = vunpack.c.l.b16 %v96
    %v418 = vunpack.c.l.b16 %v97
    %v419 = vunpack.c.l.b16 %v98
    %v420 = vunpack.c.l.b16 %v99
    %v421 = vunpack.c.l.b16 %v100
    %v422 = vunpack.c.l.b16 %v101
    %v423 = vunpack.c.l.b16 %v102
    %v424 = vunpack.c.l.b16 %v103
    %v425 = vunpack.c.l.b16 %v104
    %v426 = vunpack.c.l.b16 %v105
    %v427 = vunpack.c.l.b16 %v106
    %v428 = vunpack.c.l.b16 %v107
    %v429 = vunpack.c.l.b16 %v108
    %v430 = vunpack.c.l.b16 %v109
    %v431 = vunpack.c.l.b16 %v110
    %v432 = vunpack.c.l.b16 %v111
    %v433 = vunpack.c.l.b16 %v112
    %v434 = vunpack.c.l.b16 %v113
    %v435 = vunpack.c.l.b16 %v114
    %v436 = vunpack.c.l.b16 %v115
    %v437 = vunpack.c.l.b16 %v116
    %v438 = vunpack.c.l.b16 %v117
    %v439 = vunpack.c.l.b16 %v118
    %v440 = vunpack.c.l.b16 %v119
    %v441 = vunpack.c.l.b16 %v120
    %v442 = vunpack.c.l.b16 %v121
    %v443 = vunpack.c.l.b16 %v122
    %v444 = vunpack.c.l.b16 %v123
    %v445 = vunpack.c.l.b16 %v124
    %v446 = vunpack.c.l.b16 %v125
    %v447 = vunpack.c.l.b16 %v126
    %v448 = vunpack.c.l.b16 %v127
    %v449 = vunpack.c.l.b16 %v128
    %v450 = vunpack.c.l.b16 %v129
    %v451 = vunpack.c.l.b16 %v130
    %v452 = vunpack.c.l.b16 %v131
    %v453 = vunpack.c.l.b16 %v132
    %v454 = vunpack.c.l.b16 %v133
    %v455 = vunpack.c.l.b16 %v134
    %v456 = vunpack.c.l.b16 %v135
    %v457 = vunpack.c.l.b16 %v136
    %v458 = vunpack.c.l.b16 %v137
    %v459 = vunpack.c.l.b16 %v138
    %v460 = vunpack.c.l.b16 %v139
    %v461 = vunpack.c.l.b16 %v140
    %v462 = vunpack.c.l.b16 %v141
    %v463 = vunpack.c.l.b16 %v142
    %v464 = vunpack.c.l.b16 %v143
    %v465 = vunpack.c.l.b16 %v144
    %v466 = vunpack.c.l.b16 %v145
    %v467 = vunpack.c.l.b16 %v146
    %v468 = vunpack.c.l.b16 %v147
    %v469 = vunpack.c.l.b16 %v148
    %v470 = vunpack.c.l.b16 %v149
    %v471 = vunpack.c.l.b16 %v150
    %v472 = vunpack.c.l.b16 %v151
    %v473 = vunpack.c.l.b16 %v152
    %v474 = vunpack.c.l.b16 %v153
    %v475 = vunpack.c.l.b16 %v154
    %v476 = vunpack.c.l.b16 %v155
    %v477 = vunpack.c.l.b16 %v156
    %v478 = vunpack.c.l.b16 %v157
    %v479 = vunpack.c.l.b16 %v158
    %v480 = vunpack.c.l.b16 %v159
    %v481 = vunpack.c.l.b16 %v160
    %v482 = vunpack.c.l.b16 %v161
    %v483 = vunpack.c.l.b16 %v162
    %v484 = vunpack.c.l.b16 %v163
    %v485 = vunpack.c.l.b16 %v164
    %v486 = vunpack.c.l.b16 %v165
    %v487 = vunpack.c.l.b16 %v166
    %v488 = vunpack.c.l.b16 %v167
    %v489 = vunpack.c.l.b16 %v168
    %v490 = vunpack.c.l.b16 %v169
    %v491 = vunpack.c.l.b16 %v170
    %v492 = vunpack.c.l.b16 %v171
    %v493 = vunpack.c.l.b16 %v172
    %v494 = vunpack.c.l.b16 %v173
    %v495 = vunpack.c.l.b16 %v174
    %v496 = vunpack.c.l.b16 %v175
    %v497 = vunpack.c.l.b16 %v176
    %v498 = vunpack.c.l.b16 %v177
    %v499 = vunpack.c.l.b16 %v178
    %v500 = vunpack.c.l.b16 %v179
    %v501 = vunpack.c.l.b16 %v180
    %v502 = vunpack.c.l.b16 %v181
    %v503 = vunpack.c.l.b16 %v182
    %v504 = vunpack.c.l.b16 %v183
    %v505 = vunpack.c.l.b16 %v184
    %v506 = vunpack.c.l.b16 %v185
    %v507 = vunpack.c.l.b16 %v186
    %v508 = vunpack.c.l.b16 %v187
    %v509 = vunpack.c.l.b16 %v188
    %v510 = vunpack.c.l.b16 %v189
    %v511 = vunpack.c.l.b16 %v190
    %v512 = vpack.c.b16 %v385, %v384
    %v513 = vpack.c.b16 %v387, %v386
    %v514 = vpack.c.b16 %v389, %v388
    %v515 = vpack.c.b16 %v391, %v390
    %v516 = vpack.c.b16 %v393, %v392
    %v517 = vpack.c.b16 %v395, %v394
    %v518 = vpack.c.b16 %v397, %v396
    %v519 = vpack.c.b16 %v399, %v398
    %v520 = vpack.c.b16 %v401, %v400
    %v521 = vpack.c.b16 %v403, %v402
    %v522 = vpack.c.b16 %v405, %v404
    %v523 = vpack.c.b16 %v407, %v406
    %v524 = vpack.c.b16 %v409, %v408
    %v525 = vpack.c.b16 %v411, %v410
    %v526 = vpack.c.b16 %v413, %v412
    %v527 = vpack.c.b16 %v415, %v414
    %v528 = vpack.c.b16 %v417, %v416
    %v529 = vpack.c.b16 %v419, %v418
    %v530 = vpack.c.b16 %v421, %v420
    %v531 = vpack.c.b16 %v423, %v422
    %v532 = vpack.c.b16 %v425, %v424
    %v533 = vpack.c.b16 %v427, %v426
    %v534 = vpack.c.b16 %v429, %v428
    %v535 = vpack.c.b16 %v431, %v430
    %v536 = vpack.c.b16 %v433, %v432
    %v537 = vpack.c.b16 %v435, %v434
    %v538 = vpack.c.b16 %v437, %v436
    %v539 = vpack.c.b16 %v439, %v438
    %v540 = vpack.c.b16 %v441, %v440
    %v541 = vpack.c.b16 %v443, %v442
    %v542 = vpack.c.b16 %v445, %v444
    %v543 = vpack.c.b16 %v447, %v446
    %v544 = vpack.c.b16 %v449, %v448
    %v545 = vpack.c.b16 %v451, %v450
    %v546 = vpack.c.b16 %v453, %v452
    %v547 = vpack.c.b16 %v455, %v454
    %v548 = vpack.c.b16 %v457, %v456
    %v549 = vpack.c.b16 %v459, %v458
    %v550 = vpack.c.b16 %v461, %v460
    %v551 = vpack.c.b16 %v463, %v462
    %v552 = vpack.c.b16 %v465, %v464
    %v553 = vpack.c.b16 %v467, %v466
    %v554 = vpack.c.b16 %v469, %v468
    %v555 = vpack.c.b16 %v471, %v470
    %v556 = vpack.c.b16 %v473, %v472
    %v557 = vpack.c.b16 %v475, %v474
    %v558 = vpack.c.b16 %v477, %v476
    %v559 = vpack.c.b16 %v479, %v478
    %v560 = vpack.c.b16 %v481, %v480
    %v561 = vpack.c.b16 %v483, %v482
    %v562 = vpack.c.b16 %v485, %v484
    %v563 = vpack.c.b16 %v487, %v486
    %v564 = vpack.c.b16 %v489, %v488
    %v565 = vpack.c.b16 %v491, %v490
    %v566 = vpack.c.b16 %v493, %v492
    %v567 = vpack.c.b16 %v495, %v494
    %v568 = vpack.c.b16 %v497, %v496
    %v569 = vpack.c.b16 %v499, %v498
    %v570 = vpack.c.b16 %v501, %v500
    %v571 = vpack.c.b16 %v503, %v502
    %v572 = vpack.c.b16 %v505, %v504
    %v573 = vpack.c.b16 %v507, %v506
    %v574 = vpack.c.b16 %v509, %v508
    %v575 = vpack.c.b16 %v511, %v510
    %640 = vmatprep.subr.bf16.mxu0 0
    %641 = vmatpush1.bf16.msra.mxu0 %v512
    %642 = vmatprep.subr.bf16.mxu0 0
    %643 = vmatpush1.bf16.msra.mxu0 %v513
    %644 = vmatprep.subr.bf16.mxu0 0
    %645 = vmatpush1.bf16.msra.mxu0 %v514
    %646 = vmatprep.subr.bf16.mxu0 0
    %647 = vmatpush1.bf16.msra.mxu0 %v515
    %648 = vmatprep.subr.bf16.mxu0 0
    %649 = vmatpush1.bf16.msra.mxu0 %v516
    %650 = vmatprep.subr.bf16.mxu0 0
    %651 = vmatpush1.bf16.msra.mxu0 %v517
    %652 = vmatprep.subr.bf16.mxu0 0
    %653 = vmatpush1.bf16.msra.mxu0 %v518
    %654 = vmatprep.subr.bf16.mxu0 0
    %655 = vmatpush1.bf16.msra.mxu0 %v519
    %656 = vmatprep.subr.bf16.mxu0 0
    %657 = vmatpush1.bf16.msra.mxu0 %v520
    %658 = vmatprep.subr.bf16.mxu0 0
    %659 = vmatpush1.bf16.msra.mxu0 %v521
    %660 = vmatprep.subr.bf16.mxu0 0
    %661 = vmatpush1.bf16.msra.mxu0 %v522
    %662 = vmatprep.subr.bf16.mxu0 0
    %663 = vmatpush1.bf16.msra.mxu0 %v523
    %664 = vmatprep.subr.bf16.mxu0 0
    %665 = vmatpush1.bf16.msra.mxu0 %v524
    %666 = vmatprep.subr.bf16.mxu0 0
    %667 = vmatpush1.bf16.msra.mxu0 %v525
    %668 = vmatprep.subr.bf16.mxu0 0
    %669 = vmatpush1.bf16.msra.mxu0 %v526
    %670 = vmatprep.subr.bf16.mxu0 0
    %671 = vmatpush1.bf16.msra.mxu0 %v527
    %672 = vmatprep.mubr.bf16.mxu0 %v236
    %673 = vmatmul.mubr.bf16.gmra.mrb[0].mxu0 %v222
    %v674 = vpop.f32.mrb[0].mxu0
    %v675 = vadd.f32 %v196, %v674
    %v676 = vpop.f32.mrb[0].mxu0
    %v677 = vpop.f32.mrb[0].mxu0
    %v678 = vpop.f32.mrb[0].mxu0
    %679 = vdwg.mxu0
    %680 = vmatprep.subr.bf16.mxu0 0
    %681 = vmatpush1.bf16.msra.mxu0 %v528
    %682 = vmatprep.subr.bf16.mxu0 0
    %683 = vmatpush1.bf16.msra.mxu0 %v529
    %684 = vmatprep.subr.bf16.mxu0 0
    %685 = vmatpush1.bf16.msra.mxu0 %v530
    %686 = vmatprep.subr.bf16.mxu0 0
    %687 = vmatpush1.bf16.msra.mxu0 %v531
    %688 = vmatprep.subr.bf16.mxu0 0
    %689 = vmatpush1.bf16.msra.mxu0 %v532
    %690 = vmatprep.subr.bf16.mxu0 0
    %691 = vmatpush1.bf16.msra.mxu0 %v533
    %692 = vmatprep.subr.bf16.mxu0 0
    %693 = vmatpush1.bf16.msra.mxu0 %v534
    %694 = vmatprep.subr.bf16.mxu0 0
    %695 = vmatpush1.bf16.msra.mxu0 %v535
    %696 = vmatprep.subr.bf16.mxu0 0
    %697 = vmatpush1.bf16.msra.mxu0 %v536
    %698 = vmatprep.subr.bf16.mxu0 0
    %699 = vmatpush1.bf16.msra.mxu0 %v537
    %700 = vmatprep.subr.bf16.mxu0 0
    %701 = vmatpush1.bf16.msra.mxu0 %v538
    %702 = vmatprep.subr.bf16.mxu0 0
    %703 = vmatpush1.bf16.msra.mxu0 %v539
    %704 = vmatprep.subr.bf16.mxu0 0
    %705 = vmatpush1.bf16.msra.mxu0 %v540
    %706 = vmatprep.subr.bf16.mxu0 0
    %707 = vmatpush1.bf16.msra.mxu0 %v541
    %708 = vmatprep.subr.bf16.mxu0 0
    %709 = vmatpush1.bf16.msra.mxu0 %v542
    %710 = vmatprep.subr.bf16.mxu0 0
    %711 = vmatpush1.bf16.msra.mxu0 %v543
    %712 = vmatprep.mubr.bf16.mxu0 %v246
    %713 = vmatmul.mubr.bf16.gmra.mrb[0].mxu0 %v244
    %v714 = vpop.f32.mrb[0].mxu0
    %v715 = vadd.f32 %v675, %v714
    %v716 = vpop.f32.mrb[0].mxu0
    %v717 = vpop.f32.mrb[0].mxu0
    %v718 = vpop.f32.mrb[0].mxu0
    %719 = vdwg.mxu0
    %720 = vmatprep.subr.bf16.mxu0 0
    %721 = vmatpush1.bf16.msra.mxu0 %v544
    %722 = vmatprep.subr.bf16.mxu0 0
    %723 = vmatpush1.bf16.msra.mxu0 %v545
    %724 = vmatprep.subr.bf16.mxu0 0
    %725 = vmatpush1.bf16.msra.mxu0 %v546
    %726 = vmatprep.subr.bf16.mxu0 0
    %727 = vmatpush1.bf16.msra.mxu0 %v547
    %728 = vmatprep.subr.bf16.mxu0 0
    %729 = vmatpush1.bf16.msra.mxu0 %v548
    %730 = vmatprep.subr.bf16.mxu0 0
    %731 = vmatpush1.bf16.msra.mxu0 %v549
    %732 = vmatprep.subr.bf16.mxu0 0
    %733 = vmatpush1.bf16.msra.mxu0 %v550
    %734 = vmatprep.subr.bf16.mxu0 0
    %735 = vmatpush1.bf16.msra.mxu0 %v551
    %736 = vmatprep.subr.bf16.mxu0 0
    %737 = vmatpush1.bf16.msra.mxu0 %v552
    %738 = vmatprep.subr.bf16.mxu0 0
    %739 = vmatpush1.bf16.msra.mxu0 %v553
    %740 = vmatprep.subr.bf16.mxu0 0
    %741 = vmatpush1.bf16.msra.mxu0 %v554
    %742 = vmatprep.subr.bf16.mxu0 0
    %743 = vmatpush1.bf16.msra.mxu0 %v555
    %744 = vmatprep.subr.bf16.mxu0 0
    %745 = vmatpush1.bf16.msra.mxu0 %v556
    %746 = vmatprep.subr.bf16.mxu0 0
    %747 = vmatpush1.bf16.msra.mxu0 %v557
    %748 = vmatprep.subr.bf16.mxu0 0
    %749 = vmatpush1.bf16.msra.mxu0 %v558
    %750 = vmatprep.subr.bf16.mxu0 0
    %751 = vmatpush1.bf16.msra.mxu0 %v559
    %752 = vmatprep.mubr.bf16.mxu0 %v243
    %753 = vmatmul.mubr.bf16.gmra.mrb[0].mxu0 %v229
    %v754 = vpop.f32.mrb[0].mxu0
    %v755 = vadd.f32 %v715, %v754
    %v756 = vpop.f32.mrb[0].mxu0
    %v757 = vpop.f32.mrb[0].mxu0
    %v758 = vpop.f32.mrb[0].mxu0
    %759 = vdwg.mxu0
    %760 = vmatprep.subr.bf16.mxu0 0
    %761 = vmatpush1.bf16.msra.mxu0 %v560
    %762 = vmatprep.subr.bf16.mxu0 0
    %763 = vmatpush1.bf16.msra.mxu0 %v561
    %764 = vmatprep.subr.bf16.mxu0 0
    %765 = vmatpush1.bf16.msra.mxu0 %v562
    %766 = vmatprep.subr.bf16.mxu0 0
    %767 = vmatpush1.bf16.msra.mxu0 %v563
    %768 = vmatprep.subr.bf16.mxu0 0
    %769 = vmatpush1.bf16.msra.mxu0 %v564
    %770 = vmatprep.subr.bf16.mxu0 0
    %771 = vmatpush1.bf16.msra.mxu0 %v565
    %772 = vmatprep.subr.bf16.mxu0 0
    %773 = vmatpush1.bf16.msra.mxu0 %v566
    %774 = vmatprep.subr.bf16.mxu0 0
    %775 = vmatpush1.bf16.msra.mxu0 %v567
    %776 = vmatprep.subr.bf16.mxu0 0
    %777 = vmatpush1.bf16.msra.mxu0 %v568
    %778 = vmatprep.subr.bf16.mxu0 0
    %779 = vmatpush1.bf16.msra.mxu0 %v569
    %780 = vmatprep.subr.bf16.mxu0 0
    %781 = vmatpush1.bf16.msra.mxu0 %v570
    %782 = vmatprep.subr.bf16.mxu0 0
    %783 = vmatpush1.bf16.msra.mxu0 %v571
    %784 = vmatprep.subr.bf16.mxu0 0
    %785 = vmatpush1.bf16.msra.mxu0 %v572
    %786 = vmatprep.subr.bf16.mxu0 0
    %787 = vmatpush1.bf16.msra.mxu0 %v573
    %788 = vmatprep.subr.bf16.mxu0 0
    %789 = vmatpush1.bf16.msra.mxu0 %v574
    %790 = vmatprep.subr.bf16.mxu0 0
    %791 = vmatpush1.bf16.msra.mxu0 %v575
    %792 = vmatprep.mubr.bf16.mxu0 %v247
    %793 = vmatmul.mubr.bf16.gmra.mrb[0].mxu0 %v245
    %v794 = vpop.f32.mrb[0].mxu0
    %v795 = vadd.f32 %v755, %v794
    %v796 = vpop.f32.mrb[0].mxu0
    %v797 = vpop.f32.mrb[0].mxu0
    %v798 = vpop.f32.mrb[0].mxu0
    %799 = vdwg.mxu0
    %v800 = vmax.f32 %v795, 0.0
    %v801 = vpack.c.bf16 %v800, %v800
    %v802 = vld [vmem:[%s3] sm:$0xf]
    %v803 = vld [vmem:[%s3 + $0x4] sm:$0xf]
    %v804 = vld [vmem:[%s3 + $0x8] sm:$0xf]
    %v805 = vld [vmem:[%s3 + $0xc] sm:$0xf]
    %v806 = vld [vmem:[%s3 + $0x10] sm:$0xf]
    %v807 = vld [vmem:[%s3 + $0x14] sm:$0xf]
    %v808 = vld [vmem:[%s3 + $0x18] sm:$0xf]
    %v809 = vld [vmem:[%s3 + $0x1c] sm:$0xf]
    %v810 = vld [vmem:[%s3 + $0x20] sm:$0xf]
    %v811 = vld [vmem:[%s3 + $0x24] sm:$0xf]
    %v812 = vld [vmem:[%s3 + $0x28] sm:$0xf]
    %v813 = vld [vmem:[%s3 + $0x2c] sm:$0xf]
    %v814 = vld [vmem:[%s3 + $0x30] sm:$0xf]
    %v815 = vld [vmem:[%s3 + $0x34] sm:$0xf]
    %v816 = vld [vmem:[%s3 + $0x38] sm:$0xf]
    %v817 = vld [vmem:[%s3 + $0x3c] sm:$0xf]
    %v818 = vld [vmem:[%s4] sm:$0x1]
    %v820 = vlaneseq
    %v821 = vshrl.u32 %v820, 7
    %v822 = vsub.s32 0, %v821
    %v823 = vrot.slane %v818, %v822
    %v841 = vunpack.c.l.b16 %v802
    %v842 = vunpack.c.l.b16 %v803
    %v843 = vunpack.c.l.b16 %v804
    %v844 = vunpack.c.l.b16 %v805
    %v845 = vunpack.c.l.b16 %v806
    %v846 = vunpack.c.l.b16 %v807
    %v847 = vunpack.c.l.b16 %v808
    %v848 = vunpack.c.l.b16 %v809
    %v849 = vunpack.c.l.b16 %v810
    %v850 = vunpack.c.l.b16 %v811
    %v851 = vunpack.c.l.b16 %v812
    %v852 = vunpack.c.l.b16 %v813
    %v853 = vunpack.c.l.b16 %v814
    %v854 = vunpack.c.l.b16 %v815
    %v855 = vunpack.c.l.b16 %v816
    %v856 = vunpack.c.l.b16 %v817
    %v857 = vpack.c.b16 %v842, %v841
    %v858 = vpack.c.b16 %v844, %v843
    %v859 = vpack.c.b16 %v846, %v845
    %v860 = vpack.c.b16 %v848, %v847
    %v861 = vpack.c.b16 %v850, %v849
    %v862 = vpack.c.b16 %v852, %v851
    %v863 = vpack.c.b16 %v854, %v853
    %v864 = vpack.c.b16 %v856, %v855
    %873 = vmatprep.subr.bf16.mxu0 0
    %874 = vmatpush1.bf16.msra.mxu0 %v857
    %875 = vmatprep.subr.bf16.mxu0 0
    %876 = vmatpush1.bf16.msra.mxu0 %v858
    %877 = vmatprep.subr.bf16.mxu0 0
    %878 = vmatpush1.bf16.msra.mxu0 %v859
    %879 = vmatprep.subr.bf16.mxu0 0
    %880 = vmatpush1.bf16.msra.mxu0 %v860
    %881 = vmatprep.subr.bf16.mxu0 0
    %882 = vmatpush1.bf16.msra.mxu0 %v861
    %883 = vmatprep.subr.bf16.mxu0 0
    %884 = vmatpush1.bf16.msra.mxu0 %v862
    %885 = vmatprep.subr.bf16.mxu0 0
    %886 = vmatpush1.bf16.msra.mxu0 %v863
    %887 = vmatprep.subr.bf16.mxu0 0
    %888 = vmatpush1.bf16.msra.mxu0 %v864
    %889 = vmatprep.subr.bf16.mxu0 0
    %890 = vmatpush1.bf16.msra.mxu0 0
    %891 = vmatprep.subr.bf16.mxu0 0
    %892 = vmatpush1.bf16.msra.mxu0 0
    %893 = vmatprep.subr.bf16.mxu0 0
    %894 = vmatpush1.bf16.msra.mxu0 0
    %895 = vmatprep.subr.bf16.mxu0 0
    %896 = vmatpush1.bf16.msra.mxu0 0
    %897 = vmatprep.subr.bf16.mxu0 0
    %898 = vmatpush1.bf16.msra.mxu0 0
    %899 = vmatprep.subr.bf16.mxu0 0
    %900 = vmatpush1.bf16.msra.mxu0 0
    %901 = vmatprep.subr.bf16.mxu0 0
    %902 = vmatpush1.bf16.msra.mxu0 0
    %903 = vmatprep.subr.bf16.mxu0 0
    %904 = vmatpush1.bf16.msra.mxu0 0
    %905 = vmatprep.mubr.bf16.mxu0 0
    %906 = vmatmul.mubr.bf16.gmra.mrb[0].mxu0 %v801
    %v907 = vpop.f32.mrb[0].mxu0
    %v908 = vadd.f32 %v823, %v907
    %v909 = vpop.f32.mrb[0].mxu0
    %v910 = vpop.f32.mrb[0].mxu0
    %v911 = vpop.f32.mrb[0].mxu0
    %912 = vdwg.mxu0
    %v913 = vpack.c.bf16 %v908, %v908
    %v914 = vld [vmem:[%s5] sm:$0xf]
    %v915 = vld [vmem:[%s5 + $0x4] sm:$0xf]
    %v916 = vld [vmem:[%s5 + $0x8] sm:$0xf]
    %v917 = vld [vmem:[%s5 + $0xc] sm:$0xf]
    %v918 = vld [vmem:[%s6] sm:$0x1]
    %v920 = vlaneseq
    %v921 = vshrl.u32 %v920, 7
    %v922 = vsub.s32 0, %v921
    %v923 = vrot.slane %v918, %v922
    %v929 = vunpack.c.l.b16 %v914
    %v930 = vunpack.c.l.b16 %v915
    %v931 = vunpack.c.l.b16 %v916
    %v932 = vunpack.c.l.b16 %v917
    %v933 = vpack.c.b16 %v930, %v929
    %v934 = vpack.c.b16 %v932, %v931
    %vm937 = vcmask 261120
    %v939 = vsel %vm937, %v913, 0
    %941 = vmatprep.subr.bf16.mxu0 0
    %942 = vmatpush1.bf16.msra.mxu0 %v933
    %943 = vmatprep.subr.bf16.mxu0 0
    %944 = vmatpush1.bf16.msra.mxu0 %v934
    %945 = vmatprep.subr.bf16.mxu0 0
    %946 = vmatpush1.bf16.msra.mxu0 0
    %947 = vmatprep.subr.bf16.mxu0 0
    %948 = vmatpush1.bf16.msra.mxu0 0
    %949 = vmatprep.subr.bf16.mxu0 0
    %950 = vmatpush1.bf16.msra.mxu0 0
    %951 = vmatprep.subr.bf16.mxu0 0
    %952 = vmatpush1.bf16.msra.mxu0 0
    %953 = vmatprep.subr.bf16.mxu0 0
    %954 = vmatpush1.bf16.msra.mxu0 0
    %955 = vmatprep.subr.bf16.mxu0 0
    %956 = vmatpush1.bf16.msra.mxu0 0
    %957 = vmatprep.subr.bf16.mxu0 0
    %958 = vmatpush1.bf16.msra.mxu0 0
    %959 = vmatprep.subr.bf16.mxu0 0
    %960 = vmatpush1.bf16.msra.mxu0 0
    %961 = vmatprep.subr.bf16.mxu0 0
    %962 = vmatpush1.bf16.msra.mxu0 0
    %963 = vmatprep.subr.bf16.mxu0 0
    %964 = vmatpush1.bf16.msra.mxu0 0
    %965 = vmatprep.subr.bf16.mxu0 0
    %966 = vmatpush1.bf16.msra.mxu0 0
    %967 = vmatprep.subr.bf16.mxu0 0
    %968 = vmatpush1.bf16.msra.mxu0 0
    %969 = vmatprep.subr.bf16.mxu0 0
    %970 = vmatpush1.bf16.msra.mxu0 0
    %971 = vmatprep.subr.bf16.mxu0 0
    %972 = vmatpush1.bf16.msra.mxu0 0
    %973 = vmatprep.mubr.bf16.mxu0 0
    %974 = vmatmul.mubr.bf16.gmra.mrb[0].mxu0 %v939
    %v975 = vpop.f32.mrb[0].mxu0
    %v976 = vadd.f32 %v923, %v975
    %v977 = vpop.f32.mrb[0].mxu0
    %v978 = vpop.f32.mrb[0].mxu0
    %v979 = vpop.f32.mrb[0].mxu0
    %980 = vdwg.mxu0
    %v981 = vmax.f32 %v976, 0.0
    %v982 = vpack.c.bf16 %v981, %v981
    %v983 = vld [vmem:[#allocation5] sm:$0xff]
    %v984 = vld [vmem:[#allocation5 + $0x8] sm:$0xff]
    %v985 = vld [vmem:[#allocation5 + $0x10] sm:$0xff]
    %v986 = vld [vmem:[#allocation5 + $0x18] sm:$0xff]
    %v987 = vld [vmem:[#allocation5 + $0x20] sm:$0xff]
    %v988 = vld [vmem:[#allocation5 + $0x28] sm:$0xff]
    %v989 = vld [vmem:[#allocation5 + $0x30] sm:$0xff]
    %v990 = vld [vmem:[#allocation5 + $0x38] sm:$0xff]
    %v991 = vld [vmem:[#allocation5 + $0x40] sm:$0xff]
    %v992 = vld [vmem:[#allocation5 + $0x48] sm:$0xff]
    %v993 = vld [vmem:[#allocation5 + $0x50] sm:$0xff]
    %v994 = vld [vmem:[#allocation5 + $0x58] sm:$0xff]
    %v995 = vld [vmem:[#allocation5 + $0x60] sm:$0xff]
    %v996 = vld [vmem:[#allocation5 + $0x68] sm:$0xff]
    %v997 = vld [vmem:[#allocation5 + $0x70] sm:$0xff]
    %v998 = vld [vmem:[#allocation5 + $0x78] sm:$0xff]
    %v999 = vld [vmem:[#allocation5 + $0x80] sm:$0xff]
    %v1000 = vld [vmem:[#allocation5 + $0x88] sm:$0xff]
    %v1001 = vld [vmem:[#allocation5 + $0x90] sm:$0xff]
    %v1002 = vld [vmem:[#allocation5 + $0x98] sm:$0xff]
    %v1003 = vld [vmem:[#allocation5 + $0xa0] sm:$0xff]
    %v1004 = vld [vmem:[#allocation5 + $0xa8] sm:$0xff]
    %v1005 = vld [vmem:[#allocation5 + $0xb0] sm:$0xff]
    %v1006 = vld [vmem:[#allocation5 + $0xb8] sm:$0xff]
    %v1007 = vld [vmem:[#allocation5 + $0xc0] sm:$0xff]
    %v1008 = vld [vmem:[#allocation5 + $0xc8] sm:$0xff]
    %v1009 = vld [vmem:[#allocation5 + $0xd0] sm:$0xff]
    %v1010 = vld [vmem:[#allocation5 + $0xd8] sm:$0xff]
    %v1011 = vld [vmem:[#allocation5 + $0xe0] sm:$0xff]
    %v1012 = vld [vmem:[#allocation5 + $0xe8] sm:$0xff]
    %v1013 = vld [vmem:[#allocation5 + $0xf0] sm:$0xff]
    %v1014 = vld [vmem:[#allocation5 + $0xf8] sm:$0xff]
    %v1015 = vld [vmem:[#allocation5 + $0x100] sm:$0xff]
    %v1016 = vld [vmem:[#allocation5 + $0x108] sm:$0xff]
    %v1017 = vld [vmem:[#allocation5 + $0x110] sm:$0xff]
    %v1018 = vld [vmem:[#allocation5 + $0x118] sm:$0xff]
    %v1019 = vld [vmem:[#allocation5 + $0x120] sm:$0xff]
    %v1020 = vld [vmem:[#allocation5 + $0x128] sm:$0xff]
    %v1021 = vld [vmem:[#allocation5 + $0x130] sm:$0xff]
    %v1022 = vld [vmem:[#allocation5 + $0x138] sm:$0xff]
    %v1023 = vld [vmem:[#allocation5 + $0x140] sm:$0xff]
    %v1024 = vld [vmem:[#allocation5 + $0x148] sm:$0xff]
    %v1025 = vld [vmem:[#allocation5 + $0x150] sm:$0xff]
    %v1026 = vld [vmem:[#allocation5 + $0x158] sm:$0xff]
    %v1027 = vld [vmem:[#allocation5 + $0x160] sm:$0xff]
    %v1028 = vld [vmem:[#allocation5 + $0x168] sm:$0xff]
    %v1029 = vld [vmem:[#allocation5 + $0x170] sm:$0xff]
    %v1030 = vld [vmem:[#allocation5 + $0x178] sm:$0xff]
    %v1031 = vld [vmem:[#allocation5 + $0x180] sm:$0xff]
    %v1032 = vld [vmem:[#allocation5 + $0x188] sm:$0xff]
    %v1033 = vld [vmem:[#allocation5 + $0x190] sm:$0xff]
    %v1034 = vld [vmem:[#allocation5 + $0x198] sm:$0xff]
    %v1035 = vld [vmem:[#allocation5 + $0x1a0] sm:$0xff]
    %v1036 = vld [vmem:[#allocation5 + $0x1a8] sm:$0xff]
    %v1037 = vld [vmem:[#allocation5 + $0x1b0] sm:$0xff]
    %v1038 = vld [vmem:[#allocation5 + $0x1b8] sm:$0xff]
    %v1039 = vld [vmem:[#allocation5 + $0x1c0] sm:$0xff]
    %v1040 = vld [vmem:[#allocation5 + $0x1c8] sm:$0xff]
    %v1041 = vld [vmem:[#allocation5 + $0x1d0] sm:$0xff]
    %v1042 = vld [vmem:[#allocation5 + $0x1d8] sm:$0xff]
    %v1043 = vld [vmem:[#allocation5 + $0x1e0] sm:$0xff]
    %v1044 = vld [vmem:[#allocation5 + $0x1e8] sm:$0xff]
    %v1045 = vld [vmem:[#allocation5 + $0x1f0] sm:$0xff]
    %v1046 = vld [vmem:[#allocation5 + $0x1f8] sm:$0xff]
    %v1047 = vld [vmem:[%s8] sm:$0xff]
    %v1049 = vlaneseq
    %v1050 = vshrl.u32 %v1049, 7
    %v1051 = vsub.s32 0, %v1050
    %v1052 = vrot.slane %v1047, %v1051
    %v1053 = vlaneseq
    %v1054 = vshrl.u32 %v1053, 7
    %v1055 = vsub.s32 1, %v1054
    %v1056 = vrot.slane %v1047, %v1055
    %v1057 = vlaneseq
    %v1058 = vshrl.u32 %v1057, 7
    %v1059 = vsub.s32 2, %v1058
    %v1060 = vrot.slane %v1047, %v1059
    %v1061 = vlaneseq
    %v1062 = vshrl.u32 %v1061, 7
    %v1063 = vsub.s32 3, %v1062
    %v1064 = vrot.slane %v1047, %v1063
    %v1065 = vlaneseq
    %v1066 = vshrl.u32 %v1065, 7
    %v1067 = vsub.s32 4, %v1066
    %v1068 = vrot.slane %v1047, %v1067
    %v1069 = vlaneseq
    %v1070 = vshrl.u32 %v1069, 7
    %v1071 = vsub.s32 5, %v1070
    %v1072 = vrot.slane %v1047, %v1071
    %v1073 = vlaneseq
    %v1074 = vshrl.u32 %v1073, 7
    %v1075 = vsub.s32 6, %v1074
    %v1076 = vrot.slane %v1047, %v1075
    %v1077 = vlaneseq
    %v1078 = vshrl.u32 %v1077, 7
    %v1079 = vsub.s32 7, %v1078
    %v1080 = vrot.slane %v1047, %v1079
    %v1153 = vunpack.c.l.b16 %v983
    %v1154 = vunpack.c.h.b16 %v983
    %v1155 = vunpack.c.l.b16 %v984
    %v1156 = vunpack.c.h.b16 %v984
    %v1157 = vunpack.c.l.b16 %v985
    %v1158 = vunpack.c.h.b16 %v985
    %v1159 = vunpack.c.l.b16 %v986
    %v1160 = vunpack.c.h.b16 %v986
    %v1161 = vunpack.c.l.b16 %v987
    %v1162 = vunpack.c.h.b16 %v987
    %v1163 = vunpack.c.l.b16 %v988
    %v1164 = vunpack.c.h.b16 %v988
    %v1165 = vunpack.c.l.b16 %v989
    %v1166 = vunpack.c.h.b16 %v989
    %v1167 = vunpack.c.l.b16 %v990
    %v1168 = vunpack.c.h.b16 %v990
    %v1169 = vunpack.c.l.b16 %v991
    %v1170 = vunpack.c.h.b16 %v991
    %v1171 = vunpack.c.l.b16 %v992
    %v1172 = vunpack.c.h.b16 %v992
    %v1173 = vunpack.c.l.b16 %v993
    %v1174 = vunpack.c.h.b16 %v993
    %v1175 = vunpack.c.l.b16 %v994
    %v1176 = vunpack.c.h.b16 %v994
    %v1177 = vunpack.c.l.b16 %v995
    %v1178 = vunpack.c.h.b16 %v995
    %v1179 = vunpack.c.l.b16 %v996
    %v1180 = vunpack.c.h.b16 %v996
    %v1181 = vunpack.c.l.b16 %v997
    %v1182 = vunpack.c.h.b16 %v997
    %v1183 = vunpack.c.l.b16 %v998
    %v1184 = vunpack.c.h.b16 %v998
    %v1185 = vunpack.c.l.b16 %v999
    %v1186 = vunpack.c.h.b16 %v999
    %v1187 = vunpack.c.l.b16 %v1000
    %v1188 = vunpack.c.h.b16 %v1000
    %v1189 = vunpack.c.l.b16 %v1001
    %v1190 = vunpack.c.h.b16 %v1001
    %v1191 = vunpack.c.l.b16 %v1002
    %v1192 = vunpack.c.h.b16 %v1002
    %v1193 = vunpack.c.l.b16 %v1003
    %v1194 = vunpack.c.h.b16 %v1003
    %v1195 = vunpack.c.l.b16 %v1004
    %v1196 = vunpack.c.h.b16 %v1004
    %v1197 = vunpack.c.l.b16 %v1005
    %v1198 = vunpack.c.h.b16 %v1005
    %v1199 = vunpack.c.l.b16 %v1006
    %v1200 = vunpack.c.h.b16 %v1006
    %v1201 = vunpack.c.l.b16 %v1007
    %v1202 = vunpack.c.h.b16 %v1007
    %v1203 = vunpack.c.l.b16 %v1008
    %v1204 = vunpack.c.h.b16 %v1008
    %v1205 = vunpack.c.l.b16 %v1009
    %v1206 = vunpack.c.h.b16 %v1009
    %v1207 = vunpack.c.l.b16 %v1010
    %v1208 = vunpack.c.h.b16 %v1010
    %v1209 = vunpack.c.l.b16 %v1011
    %v1210 = vunpack.c.h.b16 %v1011
    %v1211 = vunpack.c.l.b16 %v1012
    %v1212 = vunpack.c.h.b16 %v1012
    %v1213 = vunpack.c.l.b16 %v1013
    %v1214 = vunpack.c.h.b16 %v1013
    %v1215 = vunpack.c.l.b16 %v1014
    %v1216 = vunpack.c.h.b16 %v1014
    %v1217 = vunpack.c.l.b16 %v1015
    %v1218 = vunpack.c.h.b16 %v1015
    %v1219 = vunpack.c.l.b16 %v1016
    %v1220 = vunpack.c.h.b16 %v1016
    %v1221 = vunpack.c.l.b16 %v1017
    %v1222 = vunpack.c.h.b16 %v1017
    %v1223 = vunpack.c.l.b16 %v1018
    %v1224 = vunpack.c.h.b16 %v1018
    %v1225 = vunpack.c.l.b16 %v1019
    %v1226 = vunpack.c.h.b16 %v1019
    %v1227 = vunpack.c.l.b16 %v1020
    %v1228 = vunpack.c.h.b16 %v1020
    %v1229 = vunpack.c.l.b16 %v1021
    %v1230 = vunpack.c.h.b16 %v1021
    %v1231 = vunpack.c.l.b16 %v1022
    %v1232 = vunpack.c.h.b16 %v1022
    %v1233 = vunpack.c.l.b16 %v1023
    %v1234 = vunpack.c.h.b16 %v1023
    %v1235 = vunpack.c.l.b16 %v1024
    %v1236 = vunpack.c.h.b16 %v1024
    %v1237 = vunpack.c.l.b16 %v1025
    %v1238 = vunpack.c.h.b16 %v1025
    %v1239 = vunpack.c.l.b16 %v1026
    %v1240 = vunpack.c.h.b16 %v1026
    %v1241 = vunpack.c.l.b16 %v1027
    %v1242 = vunpack.c.h.b16 %v1027
    %v1243 = vunpack.c.l.b16 %v1028
    %v1244 = vunpack.c.h.b16 %v1028
    %v1245 = vunpack.c.l.b16 %v1029
    %v1246 = vunpack.c.h.b16 %v1029
    %v1247 = vunpack.c.l.b16 %v1030
    %v1248 = vunpack.c.h.b16 %v1030
    %v1249 = vunpack.c.l.b16 %v1031
    %v1250 = vunpack.c.h.b16 %v1031
    %v1251 = vunpack.c.l.b16 %v1032
    %v1252 = vunpack.c.h.b16 %v1032
    %v1253 = vunpack.c.l.b16 %v1033
    %v1254 = vunpack.c.h.b16 %v1033
    %v1255 = vunpack.c.l.b16 %v1034
    %v1256 = vunpack.c.h.b16 %v1034
    %v1257 = vunpack.c.l.b16 %v1035
    %v1258 = vunpack.c.h.b16 %v1035
    %v1259 = vunpack.c.l.b16 %v1036
    %v1260 = vunpack.c.h.b16 %v1036
    %v1261 = vunpack.c.l.b16 %v1037
    %v1262 = vunpack.c.h.b16 %v1037
    %v1263 = vunpack.c.l.b16 %v1038
    %v1264 = vunpack.c.h.b16 %v1038
    %v1265 = vunpack.c.l.b16 %v1039
    %v1266 = vunpack.c.h.b16 %v1039
    %v1267 = vunpack.c.l.b16 %v1040
    %v1268 = vunpack.c.h.b16 %v1040
    %v1269 = vunpack.c.l.b16 %v1041
    %v1270 = vunpack.c.h.b16 %v1041
    %v1271 = vunpack.c.l.b16 %v1042
    %v1272 = vunpack.c.h.b16 %v1042
    %v1273 = vunpack.c.l.b16 %v1043
    %v1274 = vunpack.c.h.b16 %v1043
    %v1275 = vunpack.c.l.b16 %v1044
    %v1276 = vunpack.c.h.b16 %v1044
    %v1277 = vunpack.c.l.b16 %v1045
    %v1278 = vunpack.c.h.b16 %v1045
    %v1279 = vunpack.c.l.b16 %v1046
    %v1280 = vunpack.c.h.b16 %v1046
    %v1281 = vpack.c.b16 %v1161, %v1153
    %v1282 = vpack.c.b16 %v1162, %v1154
    %v1283 = vpack.c.b16 %v1163, %v1155
    %v1284 = vpack.c.b16 %v1164, %v1156
    %v1285 = vpack.c.b16 %v1165, %v1157
    %v1286 = vpack.c.b16 %v1166, %v1158
    %v1287 = vpack.c.b16 %v1167, %v1159
    %v1288 = vpack.c.b16 %v1168, %v1160
    %v1289 = vpack.c.b16 %v1177, %v1169
    %v1290 = vpack.c.b16 %v1178, %v1170
    %v1291 = vpack.c.b16 %v1179, %v1171
    %v1292 = vpack.c.b16 %v1180, %v1172
    %v1293 = vpack.c.b16 %v1181, %v1173
    %v1294 = vpack.c.b16 %v1182, %v1174
    %v1295 = vpack.c.b16 %v1183, %v1175
    %v1296 = vpack.c.b16 %v1184, %v1176
    %v1297 = vpack.c.b16 %v1193, %v1185
    %v1298 = vpack.c.b16 %v1194, %v1186
    %v1299 = vpack.c.b16 %v1195, %v1187
    %v1300 = vpack.c.b16 %v1196, %v1188
    %v1301 = vpack.c.b16 %v1197, %v1189
    %v1302 = vpack.c.b16 %v1198, %v1190
    %v1303 = vpack.c.b16 %v1199, %v1191
    %v1304 = vpack.c.b16 %v1200, %v1192
    %v1305 = vpack.c.b16 %v1209, %v1201
    %v1306 = vpack.c.b16 %v1210, %v1202
    %v1307 = vpack.c.b16 %v1211, %v1203
    %v1308 = vpack.c.b16 %v1212, %v1204
    %v1309 = vpack.c.b16 %v1213, %v1205
    %v1310 = vpack.c.b16 %v1214, %v1206
    %v1311 = vpack.c.b16 %v1215, %v1207
    %v1312 = vpack.c.b16 %v1216, %v1208
    %v1313 = vpack.c.b16 %v1225, %v1217
    %v1314 = vpack.c.b16 %v1226, %v1218
    %v1315 = vpack.c.b16 %v1227, %v1219
    %v1316 = vpack.c.b16 %v1228, %v1220
    %v1317 = vpack.c.b16 %v1229, %v1221
    %v1318 = vpack.c.b16 %v1230, %v1222
    %v1319 = vpack.c.b16 %v1231, %v1223
    %v1320 = vpack.c.b16 %v1232, %v1224
    %v1321 = vpack.c.b16 %v1241, %v1233
    %v1322 = vpack.c.b16 %v1242, %v1234
    %v1323 = vpack.c.b16 %v1243, %v1235
    %v1324 = vpack.c.b16 %v1244, %v1236
    %v1325 = vpack.c.b16 %v1245, %v1237
    %v1326 = vpack.c.b16 %v1246, %v1238
    %v1327 = vpack.c.b16 %v1247, %v1239
    %v1328 = vpack.c.b16 %v1248, %v1240
    %v1329 = vpack.c.b16 %v1257, %v1249
    %v1330 = vpack.c.b16 %v1258, %v1250
    %v1331 = vpack.c.b16 %v1259, %v1251
    %v1332 = vpack.c.b16 %v1260, %v1252
    %v1333 = vpack.c.b16 %v1261, %v1253
    %v1334 = vpack.c.b16 %v1262, %v1254
    %v1335 = vpack.c.b16 %v1263, %v1255
    %v1336 = vpack.c.b16 %v1264, %v1256
    %v1337 = vpack.c.b16 %v1273, %v1265
    %v1338 = vpack.c.b16 %v1274, %v1266
    %v1339 = vpack.c.b16 %v1275, %v1267
    %v1340 = vpack.c.b16 %v1276, %v1268
    %v1341 = vpack.c.b16 %v1277, %v1269
    %v1342 = vpack.c.b16 %v1278, %v1270
    %v1343 = vpack.c.b16 %v1279, %v1271
    %v1344 = vpack.c.b16 %v1280, %v1272
    %1409 = vmatprep.subr.bf16.mxu0 %v1282
    %1410 = vmatpush1.bf16.msra.mxu0 %v1281
    %1411 = vmatprep.subr.bf16.mxu0 %v1290
    %1412 = vmatpush1.bf16.msra.mxu0 %v1289
    %1413 = vmatprep.subr.bf16.mxu0 %v1298
    %1414 = vmatpush1.bf16.msra.mxu0 %v1297
    %1415 = vmatprep.subr.bf16.mxu0 %v1306
    %1416 = vmatpush1.bf16.msra.mxu0 %v1305
    %1417 = vmatprep.subr.bf16.mxu0 %v1314
    %1418 = vmatpush1.bf16.msra.mxu0 %v1313
    %1419 = vmatprep.subr.bf16.mxu0 %v1322
    %1420 = vmatpush1.bf16.msra.mxu0 %v1321
    %1421 = vmatprep.subr.bf16.mxu0 %v1330
    %1422 = vmatpush1.bf16.msra.mxu0 %v1329
    %1423 = vmatprep.subr.bf16.mxu0 %v1338
    %1424 = vmatpush1.bf16.msra.mxu0 %v1337
    %1425 = vmatprep.subr.bf16.mxu0 0
    %1426 = vmatpush1.bf16.msra.mxu0 0
    %1427 = vmatprep.subr.bf16.mxu0 0
    %1428 = vmatpush1.bf16.msra.mxu0 0
    %1429 = vmatprep.subr.bf16.mxu0 0
    %1430 = vmatpush1.bf16.msra.mxu0 0
    %1431 = vmatprep.subr.bf16.mxu0 0
    %1432 = vmatpush1.bf16.msra.mxu0 0
    %1433 = vmatprep.subr.bf16.mxu0 0
    %1434 = vmatpush1.bf16.msra.mxu0 0
    %1435 = vmatprep.subr.bf16.mxu0 0
    %1436 = vmatpush1.bf16.msra.mxu0 0
    %1437 = vmatprep.subr.bf16.mxu0 0
    %1438 = vmatpush1.bf16.msra.mxu0 0
    %1439 = vmatprep.subr.bf16.mxu0 0
    %1440 = vmatpush1.bf16.msra.mxu0 0
    %1441 = vmatprep.mubr.bf16.mxu0 0
    %1442 = vmatmul.mubr.bf16.gmra.mrb[0].mxu0 %v982
    %v1443 = vpop.f32.mrb[0].mxu0
    %v1444 = vadd.f32 %v1052, %v1443
    %v1445 = vpop.f32.mrb[0].mxu0
    %v1446 = vadd.f32 %v1056, %v1445
    %v1447 = vpop.f32.mrb[0].mxu0
    %v1448 = vpop.f32.mrb[0].mxu0
    %1449 = vdwg.mxu0
    %1450 = vmatprep.subr.bf16.mxu0 %v1284
    %1451 = vmatpush1.bf16.msra.mxu0 %v1283
    %1452 = vmatprep.subr.bf16.mxu0 %v1292
    %1453 = vmatpush1.bf16.msra.mxu0 %v1291
    %1454 = vmatprep.subr.bf16.mxu0 %v1300
    %1455 = vmatpush1.bf16.msra.mxu0 %v1299
    %1456 = vmatprep.subr.bf16.mxu0 %v1308
    %1457 = vmatpush1.bf16.msra.mxu0 %v1307
    %1458 = vmatprep.subr.bf16.mxu0 %v1316
    %1459 = vmatpush1.bf16.msra.mxu0 %v1315
    %1460 = vmatprep.subr.bf16.mxu0 %v1324
    %1461 = vmatpush1.bf16.msra.mxu0 %v1323
    %1462 = vmatprep.subr.bf16.mxu0 %v1332
    %1463 = vmatpush1.bf16.msra.mxu0 %v1331
    %1464 = vmatprep.subr.bf16.mxu0 %v1340
    %1465 = vmatpush1.bf16.msra.mxu0 %v1339
    %1466 = vmatprep.subr.bf16.mxu0 0
    %1467 = vmatpush1.bf16.msra.mxu0 0
    %1468 = vmatprep.subr.bf16.mxu0 0
    %1469 = vmatpush1.bf16.msra.mxu0 0
    %1470 = vmatprep.subr.bf16.mxu0 0
    %1471 = vmatpush1.bf16.msra.mxu0 0
    %1472 = vmatprep.subr.bf16.mxu0 0
    %1473 = vmatpush1.bf16.msra.mxu0 0
    %1474 = vmatprep.subr.bf16.mxu0 0
    %1475 = vmatpush1.bf16.msra.mxu0 0
    %1476 = vmatprep.subr.bf16.mxu0 0
    %1477 = vmatpush1.bf16.msra.mxu0 0
    %1478 = vmatprep.subr.bf16.mxu0 0
    %1479 = vmatpush1.bf16.msra.mxu0 0
    %1480 = vmatprep.subr.bf16.mxu0 0
    %1481 = vmatpush1.bf16.msra.mxu0 0
    %1482 = vmatprep.mubr.bf16.mxu0 0
    %1483 = vmatmul.mubr.bf16.gmra.mrb[0].mxu0 %v982
    %v1484 = vpop.f32.mrb[0].mxu0
    %v1485 = vadd.f32 %v1060, %v1484
    %v1486 = vpop.f32.mrb[0].mxu0
    %v1487 = vadd.f32 %v1064, %v1486
    %v1488 = vpop.f32.mrb[0].mxu0
    %v1489 = vpop.f32.mrb[0].mxu0
    %1490 = vdwg.mxu0
    %1491 = vmatprep.subr.bf16.mxu0 %v1286
    %1492 = vmatpush1.bf16.msra.mxu0 %v1285
    %1493 = vmatprep.subr.bf16.mxu0 %v1294
    %1494 = vmatpush1.bf16.msra.mxu0 %v1293
    %1495 = vmatprep.subr.bf16.mxu0 %v1302
    %1496 = vmatpush1.bf16.msra.mxu0 %v1301
    %1497 = vmatprep.subr.bf16.mxu0 %v1310
    %1498 = vmatpush1.bf16.msra.mxu0 %v1309
    %1499 = vmatprep.subr.bf16.mxu0 %v1318
    %1500 = vmatpush1.bf16.msra.mxu0 %v1317
    %1501 = vmatprep.subr.bf16.mxu0 %v1326
    %1502 = vmatpush1.bf16.msra.mxu0 %v1325
    %1503 = vmatprep.subr.bf16.mxu0 %v1334
    %1504 = vmatpush1.bf16.msra.mxu0 %v1333
    %1505 = vmatprep.subr.bf16.mxu0 %v1342
    %1506 = vmatpush1.bf16.msra.mxu0 %v1341
    %1507 = vmatprep.subr.bf16.mxu0 0
    %1508 = vmatpush1.bf16.msra.mxu0 0
    %1509 = vmatprep.subr.bf16.mxu0 0
    %1510 = vmatpush1.bf16.msra.mxu0 0
    %1511 = vmatprep.subr.bf16.mxu0 0
    %1512 = vmatpush1.bf16.msra.mxu0 0
    %1513 = vmatprep.subr.bf16.mxu0 0
    %1514 = vmatpush1.bf16.msra.mxu0 0
    %1515 = vmatprep.subr.bf16.mxu0 0
    %1516 = vmatpush1.bf16.msra.mxu0 0
    %1517 = vmatprep.subr.bf16.mxu0 0
    %1518 = vmatpush1.bf16.msra.mxu0 0
    %1519 = vmatprep.subr.bf16.mxu0 0
    %1520 = vmatpush1.bf16.msra.mxu0 0
    %1521 = vmatprep.subr.bf16.mxu0 0
    %1522 = vmatpush1.bf16.msra.mxu0 0
    %1523 = vmatprep.mubr.bf16.mxu0 0
    %1524 = vmatmul.mubr.bf16.gmra.mrb[0].mxu0 %v982
    %v1525 = vpop.f32.mrb[0].mxu0
    %v1526 = vadd.f32 %v1068, %v1525
    %v1527 = vpop.f32.mrb[0].mxu0
    %v1528 = vadd.f32 %v1072, %v1527
    %v1529 = vpop.f32.mrb[0].mxu0
    %v1530 = vpop.f32.mrb[0].mxu0
    %1531 = vdwg.mxu0
    %1532 = vmatprep.subr.bf16.mxu0 %v1288
    %1533 = vmatpush1.bf16.msra.mxu0 %v1287
    %1534 = vmatprep.subr.bf16.mxu0 %v1296
    %1535 = vmatpush1.bf16.msra.mxu0 %v1295
    %1536 = vmatprep.subr.bf16.mxu0 %v1304
    %1537 = vmatpush1.bf16.msra.mxu0 %v1303
    %1538 = vmatprep.subr.bf16.mxu0 %v1312
    %1539 = vmatpush1.bf16.msra.mxu0 %v1311
    %1540 = vmatprep.subr.bf16.mxu0 %v1320
    %1541 = vmatpush1.bf16.msra.mxu0 %v1319
    %1542 = vmatprep.subr.bf16.mxu0 %v1328
    %1543 = vmatpush1.bf16.msra.mxu0 %v1327
    %1544 = vmatprep.subr.bf16.mxu0 %v1336
    %1545 = vmatpush1.bf16.msra.mxu0 %v1335
    %1546 = vmatprep.subr.bf16.mxu0 %v1344
    %1547 = vmatpush1.bf16.msra.mxu0 %v1343
    %1548 = vmatprep.subr.bf16.mxu0 0
    %1549 = vmatpush1.bf16.msra.mxu0 0
    %1550 = vmatprep.subr.bf16.mxu0 0
    %1551 = vmatpush1.bf16.msra.mxu0 0
    %1552 = vmatprep.subr.bf16.mxu0 0
    %1553 = vmatpush1.bf16.msra.mxu0 0
    %1554 = vmatprep.subr.bf16.mxu0 0
    %1555 = vmatpush1.bf16.msra.mxu0 0
    %1556 = vmatprep.subr.bf16.mxu0 0
    %1557 = vmatpush1.bf16.msra.mxu0 0
    %1558 = vmatprep.subr.bf16.mxu0 0
    %1559 = vmatpush1.bf16.msra.mxu0 0
    %1560 = vmatprep.subr.bf16.mxu0 0
    %1561 = vmatpush1.bf16.msra.mxu0 0
    %1562 = vmatprep.subr.bf16.mxu0 0
    %1563 = vmatpush1.bf16.msra.mxu0 0
    %1564 = vmatprep.mubr.bf16.mxu0 0
    %1565 = vmatmul.mubr.bf16.gmra.mrb[0].mxu0 %v982
    %v1566 = vpop.f32.mrb[0].mxu0
    %v1567 = vadd.f32 %v1076, %v1566
    %v1568 = vpop.f32.mrb[0].mxu0
    %v1569 = vadd.f32 %v1080, %v1568
    %v1570 = vpop.f32.mrb[0].mxu0
    %v1571 = vpop.f32.mrb[0].mxu0
    %1572 = vdwg.mxu0
    %v1581 = vcombine.low %v1444, %v1446
    %v1582 = vcombine.low %v1485, %v1487
    %v1584 = vunpack.c.l.s4 1983009808
    %v1585 = vunpack.c.0.s8 %v1584
    %v1586 = vlaneseq
    %v1587 = vshrl.u32 %v1586, 7
    %v1588 = vsub.s32 %v1585, %v1587
    %v1589 = vrot.slane %v1581, %v1588
    %v1591 = vunpack.c.l.s4 1983009808
    %v1592 = vunpack.c.0.s8 %v1591
    %v1593 = vlaneseq
    %v1594 = vshrl.u32 %v1593, 7
    %v1595 = vsub.s32 %v1592, %v1594
    %v1596 = vrot.slane %v1582, %v1595
    %v1597 = vcombine.low %v1589, %v1596
    %v1598 = vcombine.low %v1526, %v1528
    %v1599 = vcombine.low %v1567, %v1569
    %v1601 = vunpack.c.l.s4 1983009808
    %v1602 = vunpack.c.0.s8 %v1601
    %v1603 = vlaneseq
    %v1604 = vshrl.u32 %v1603, 7
    %v1605 = vsub.s32 %v1602, %v1604
    %v1606 = vrot.slane %v1598, %v1605
    %v1608 = vunpack.c.l.s4 1983009808
    %v1609 = vunpack.c.0.s8 %v1608
    %v1610 = vlaneseq
    %v1611 = vshrl.u32 %v1610, 7
    %v1612 = vsub.s32 %v1609, %v1611
    %v1613 = vrot.slane %v1599, %v1612
    %v1614 = vcombine.low %v1606, %v1613
    %1617 = vst [vmem:[#allocation7] sm:$0xff] %v1597
    %1618 = vst [vmem:[#allocation7 + $0x8] sm:$0xff] %v1614
    // Predicated region
    $region46: #{tpu_custom_call.1} parent=1 // pred_check
      _
    $region47: #{tpu_custom_call.1} parent=1 // pred_check_branch
      %1620 = sbr.rel (0) target = $region49
    $region48: #{tpu_custom_call.1} parent=1 // pred_region
      %s1622 = ssub.s32 256, 256
      %1623 = vsyncadd [#allocation4], %s1622
      %s1625 = sshll.u32 [#allocation7], 4
      %s1626 = int_to_ptr.vmem [resolvable:$true] %s1625
      %1628 = dma.vmem_to_hbm [thread:$0]  %s1626, 256, %s9, [#allocation4]
    $region49: #{tpu_custom_call.1} parent=1 // pred_fallthru
      _
    // Predicated region
    $region50: #{tpu_custom_call.1} parent=1 // pred_check
      _
    $region51: #{tpu_custom_call.1} parent=1 // pred_check_branch
      %1630 = sbr.rel (0) target = $region53
    $region52: #{tpu_custom_call.1} parent=1 // pred_region
      %1631 = dma.done [#allocation4], 256
    $region53: #{tpu_custom_call.1} parent=1 // pred_fallthru
      _
    %1632 = vsyncpa [#allocation3], 1
    %1633 = vsyncpa [#allocation6], 1
    %1634 = vsyncpa [#allocation4], 1

</llo_original>
